<compile_context>
chip_gen: v6e
topology: v6e:2x2x1
jax: 0.10.0
libtpu: 0.0.40
codegen_flags: <defaults>
</compile_context>

<pallas_src>
from functools import partial

import jax
import jax.numpy as jnp
from jax import lax
from jax.experimental import pallas as pl
from jax.experimental.pallas import tpu as pltpu


# ----------------------------- kernel helpers -----------------------------

def _layer_norm(x, w, b, eps):
    # PyTorch nn.LayerNorm: biased variance, eps inside sqrt. Stats in f32.
    mu = jnp.mean(x, axis=-1, keepdims=True)
    var = jnp.mean((x - mu) ** 2, axis=-1, keepdims=True)
    return (x - mu) * lax.rsqrt(var + eps) * w + b


def _gelu_exact(x):
    # Matches torch.nn.functional.gelu (erf-based, non-approximate).
    inv_sqrt2 = jnp.float32(0.7071067811865476)
    return 0.5 * x * (1.0 + lax.erf(x * inv_sqrt2))


# ------------------------------- the kernel --------------------------------

def encoder_layer_kernel(
    xq_ref, xkv_ref,
    ln1_w_ref, ln1_b_ref,
    wq_ref, bq_ref, wk_ref, bk_ref, wv_ref, bv_ref,
    wo_ref, bo_ref,
    ln2_w_ref, ln2_b_ref,
    w1_ref, b1_ref, w2_ref, b2_ref,
    out_ref,
    k_scratch, v_scratch, attn_scratch,
    *, num_heads, eps, ff_chunk, s_valid,
):
    bf16 = jnp.bfloat16
    f32 = jnp.float32

    x_q = xq_ref[0]                       # (TQ, H) f32 query tile / residual
    TQ, H = x_q.shape
    S_pad = k_scratch.shape[0]
    hd = H // num_heads

    ln1_w = ln1_w_ref[0]
    ln1_b = ln1_b_ref[0]

    # --- K/V for the whole (padded) sequence: computed once per batch
    # element (qi == 0) and cached in persistent bf16 VMEM scratch.  The qi
    # grid axis is "arbitrary" (sequential per core) so later query tiles of
    # the same batch element reuse the cache. ---
    @pl.when(pl.program_id(1) == 0)
    def _():
        x_kv = xkv_ref[0].astype(f32)     # stored/DMA'd as bf16, stats in f32
        hkv = _layer_norm(x_kv, ln1_w, ln1_b, eps).astype(bf16)
        k = jnp.dot(hkv, wk_ref[...], preferred_element_type=f32) + bk_ref[0]
        v = jnp.dot(hkv, wv_ref[...], preferred_element_type=f32) + bv_ref[0]
        k_scratch[...] = k.astype(bf16)
        v_scratch[...] = v.astype(bf16)

    # --- Q projection for this tile (1/sqrt(hd) folded into wq/bq at prep) ---
    hq = _layer_norm(x_q, ln1_w, ln1_b, eps).astype(bf16)
    q = (jnp.dot(hq, wq_ref[...], preferred_element_type=f32) + bq_ref[0]).astype(bf16)

    # Static key-padding mask, only materialized when the wrapper padded S.
    need_mask = s_valid < S_pad
    if need_mask:
        col = lax.broadcasted_iota(jnp.int32, (TQ, S_pad), 1)
        key_valid = col < s_valid

    # --- attention; two heads per store so the ctx write is 2*hd lanes wide
    # (128 lanes at real wav2vec2 head_dim=64 -> unmasked vst).  Each pair's
    # (TQ, S_pad) scores temporaries are consumed and stored immediately.
    # TODO(synk): at very long S, convert this to lax.fori_loop(unroll=True)
    # to strictly bound per-head live ranges, and use a bf16 exp on v6e/v7x.
    def one_head(h):
        sl = slice(h * hd, (h + 1) * hd)
        # contraction on the last dim of both operands -> no explicit k.T
        scores = lax.dot_general(
            q[:, sl], k_scratch[:, sl],
            dimension_numbers=(((1,), (1,)), ((), ())),
            preferred_element_type=f32)                    # (TQ, S_pad) f32
        if need_mask:
            scores = jnp.where(key_valid, scores, jnp.float32(-1e30))
        m = jnp.max(scores, axis=-1, keepdims=True)
        e = jnp.exp(scores - m)
        denom = jnp.sum(e, axis=-1, keepdims=True)
        # normalize AFTER the PV matmul: (TQ, hd) multiply, not (TQ, S_pad)
        ctx = jnp.dot(e.astype(bf16), v_scratch[:, sl],
                      preferred_element_type=f32)          # (TQ, hd)
        return ctx * pl.reciprocal(denom, approx=True)     # EUP, nearly free

    for h0 in range(0, num_heads, 2):
        h1 = min(h0 + 2, num_heads)
        group = jnp.concatenate([one_head(h) for h in range(h0, h1)], axis=-1)
        attn_scratch[:, h0 * hd:h1 * hd] = group.astype(bf16)

    # --- output projection + residual ---
    attn = jnp.dot(attn_scratch[...], wo_ref[...],
                   preferred_element_type=f32) + bo_ref[0]
    res = x_q + attn                                       # (TQ, H) f32

    # --- final LayerNorm + feed-forward (chunked over I) + residual ---
    l2 = _layer_norm(res, ln2_w_ref[0], ln2_b_ref[0], eps).astype(bf16)
    inter_dim = w1_ref.shape[1]
    ff = jnp.zeros((TQ, H), f32)
    for c in range(inter_dim // ff_chunk):
        csl = slice(c * ff_chunk, (c + 1) * ff_chunk)
        inter = jnp.dot(l2, w1_ref[:, csl], preferred_element_type=f32) + b1_ref[0, csl]
        inter = _gelu_exact(inter).astype(bf16)
        ff = ff + jnp.dot(inter, w2_ref[csl, :], preferred_element_type=f32)
    ff = ff + b2_ref[0]

    out_ref[0] = (res + ff).astype(out_ref.dtype)


# ------------------------------- param prep ---------------------------------

def prepare_params(params, *, num_heads):
    """One-time parameter prep (outside the kernel): fold 1/sqrt(head_dim)
    into wq/bq, cast matmul weights to bf16; biases & LN params stay f32."""
    H = params["wq"].shape[0]
    hd = H // num_heads
    scale = jnp.float32(hd) ** -0.5
    f32, bf16 = jnp.float32, jnp.bfloat16
    return {
        "ln1_w": params["ln1_w"].astype(f32), "ln1_b": params["ln1_b"].astype(f32),
        "wq": (params["wq"].astype(f32) * scale).astype(bf16),
        "bq": (params["bq"].astype(f32) * scale),
        "wk": params["wk"].astype(bf16), "bk": params["bk"].astype(f32),
        "wv": params["wv"].astype(bf16), "bv": params["bv"].astype(f32),
        "wo": params["wo"].astype(bf16), "bo": params["bo"].astype(f32),
        "ln2_w": params["ln2_w"].astype(f32), "ln2_b": params["ln2_b"].astype(f32),
        "w1": params["w1"].astype(bf16), "b1": params["b1"].astype(f32),
        "w2": params["w2"].astype(bf16), "b2": params["b2"].astype(f32),
    }


# ------------------------------- wrapper ------------------------------------

def _round_up(n, m):
    return ((n + m - 1) // m) * m


def _vmem_capacity_bytes():
    try:
        info = pltpu.get_tpu_info()
        return int(getattr(info, "vmem_capacity_bytes", 64 * 1024 * 1024))
    except Exception:  # defensive: fall back to the smallest real VMEM (v7x)
        return 64 * 1024 * 1024


def wav2vec2_encoder_layer(x, prepared, *, num_heads, eps=1e-5, tq=None, ff_chunk=None):
    B, S, H = x.shape
    I = prepared["w1"].shape[1]

    vmem_cap = _vmem_capacity_bytes()

    # query-tile size: generation-aware default (bigger on 128 MiB v5e/v6e),
    # clamped to the data so small demos still work.
    if tq is None:
        tq = 512 if vmem_cap >= 96 * 1024 * 1024 else 256
    tq = min(tq, _round_up(S, 8))
    assert tq % 8 == 0, "tq must be a multiple of 8"

    # Pad the time axis so S_pad % tq == 0.  Padded key columns are masked in
    # the kernel (scores -> -1e30), padded query rows are sliced off below.
    s_pad = _round_up(S, tq)
    n_q = s_pad // tq
    x_pad = jnp.pad(x, ((0, 0), (0, s_pad - S), (0, 0))) if s_pad != S else x
    x_kv = x_pad.astype(jnp.bfloat16)   # K/V-path copy: half the DMA & VMEM

    # feed-forward intermediate chunk size (caps the GELU intermediate)
    if ff_chunk is None:
        ff_chunk = next((c for c in (512, 256, 128) if I % c == 0), I)
    assert I % ff_chunk == 0, "ff_chunk must divide I"

    single = pl.Buffered(1)  # constant index_map -> double-buffering is wasted VMEM

    def const_spec(shape):
        n = len(shape)
        return pl.BlockSpec(shape, lambda b, qi, n=n: (0,) * n, pipeline_mode=single)

    in_specs = [
        pl.BlockSpec((1, tq, H), lambda b, qi: (b, qi, 0)),    # x: query tile (f32)
        # full (padded) sequence for K/V, bf16; index changes only with b.
        # TODO(synk): on v7x, pipeline_mode=pl.Buffered(1) here halves its VMEM again.
        pl.BlockSpec((1, s_pad, H), lambda b, qi: (b, 0, 0)),
        const_spec((1, H)), const_spec((1, H)),                # ln1 w, b
        const_spec((H, H)), const_spec((1, H)),                # wq (pre-scaled), bq
        const_spec((H, H)), const_spec((1, H)),                # wk, bk
        const_spec((H, H)), const_spec((1, H)),                # wv, bv
        const_spec((H, H)), const_spec((1, H)),                # wo, bo
        const_spec((1, H)), const_spec((1, H)),                # ln2 w, b
        const_spec((H, I)), const_spec((1, I)),                # w1, b1
        const_spec((I, H)), const_spec((1, H)),                # w2, b2
    ]
    out_spec = pl.BlockSpec((1, tq, H), lambda b, qi: (b, qi, 0))

    # advisory cost estimate; matches the hoisted kernel (K/V once per batch
    # element, Q / attention / feed-forward once per token).
    flops = 2 * B * s_pad * (4 * H * H + 2 * s_pad * H + 2 * H * I)
    transcendentals = B * num_heads * s_pad * s_pad + B * s_pad * I
    bytes_accessed = ((4 * H * H + 2 * H * I + 10 * H + I) * 2   # bf16 weights + f32 biases/LN
                      + B * s_pad * H * (4 + 2 + 4))             # x (f32) + x_kv (bf16) + out (f32)

    kernel = partial(encoder_layer_kernel, num_heads=num_heads, eps=eps,
                     ff_chunk=ff_chunk, s_valid=S)

    out = pl.pallas_call(
        kernel,
        out_shape=jax.ShapeDtypeStruct((B, s_pad, H), x.dtype),
        grid=(B, n_q),
        in_specs=in_specs,
        out_specs=out_spec,
        scratch_shapes=[
            pltpu.VMEM((s_pad, H), jnp.bfloat16),   # cached K (whole padded seq)
            pltpu.VMEM((s_pad, H), jnp.bfloat16),   # cached V
            pltpu.VMEM((tq, H), jnp.bfloat16),      # per-head attention slab
        ],
        compiler_params=pltpu.CompilerParams(
            # qi must be sequential per core so the K/V scratch written at
            # qi == 0 is reused by the later query tiles of the same b.
            dimension_semantics=("parallel", "arbitrary"),
            vmem_limit_bytes=min(int(vmem_cap * 0.85), 100 * 1024 * 1024),
        ),
        cost_estimate=pl.CostEstimate(
            flops=flops,
            transcendentals=transcendentals,
            bytes_accessed=bytes_accessed,
        ),
    )(
        x_pad, x_kv,
        prepared["ln1_w"], prepared["ln1_b"],
        prepared["wq"], prepared["bq"], prepared["wk"], prepared["bk"],
        prepared["wv"], prepared["bv"], prepared["wo"], prepared["bo"],
        prepared["ln2_w"], prepared["ln2_b"],
        prepared["w1"], prepared["b1"], prepared["w2"], prepared["b2"],
    )
    return out[:, :S, :] if s_pad != S else out


# ------------------------------ pure-JAX reference ---------------------------

def reference(x, params, *, num_heads, eps=1e-5):
    def ln(v, w, b):
        mu = v.mean(-1, keepdims=True)
        var = ((v - mu) ** 2).mean(-1, keepdims=True)
        return (v - mu) / jnp.sqrt(var + eps) * w + b

    B, S, H = x.shape
    hd = H // num_heads
    h = ln(x, params["ln1_w"][0], params["ln1_b"][0])
    q = (h @ params["wq"] + params["bq"][0]) * (hd ** -0.5)
    k = h @ params["wk"] + params["bk"][0]
    v = h @ params["wv"] + params["bv"][0]
    q = q.reshape(B, S, num_heads, hd).transpose(0, 2, 1, 3)
    k = k.reshape(B, S, num_heads, hd).transpose(0, 2, 1, 3)
    v = v.reshape(B, S, num_heads, hd).transpose(0, 2, 1, 3)
    scores = jnp.einsum("bhqd,bhkd->bhqk", q, k)
    probs = jax.nn.softmax(scores, axis=-1)
    attn = jnp.einsum("bhqk,bhkd->bhqd", probs, v)
    attn = attn.transpose(0, 2, 1, 3).reshape(B, S, H)
    attn = attn @ params["wo"] + params["bo"][0]
    h1 = x + attn
    l2 = ln(h1, params["ln2_w"][0], params["ln2_b"][0])
    ff = jax.nn.gelu(l2 @ params["w1"] + params["b1"][0], approximate=False)
    ff = ff @ params["w2"] + params["b2"][0]
    return h1 + ff


# ---------------------------------- main -------------------------------------

if __name__ == "__main__":
    # S deliberately NOT a multiple of the query tile (exercises the padding +
    # key-mask path); tq=8 gives a 2-tile grid so the K/V cache reuse under
    # @pl.when(qi == 0) is exercised as well.
    B, S, H = 2, 12, 32           # batch, seq, hidden_size (small demo shape)
    NUM_HEADS = 4                 # head_dim = 8
    I = 64                        # intermediate_size
    EPS = 1e-5

    key = jax.random.PRNGKey(0)
    ks = jax.random.split(key, 16)

    def rnd(k, shape, scale=0.05):
        return (scale * jax.random.normal(k, shape)).astype(jnp.float32)

    params = {
        "ln1_w": rnd(ks[0], (1, H), 0.1) + 1.0,
        "ln1_b": rnd(ks[1], (1, H), 0.1),
        "wq": rnd(ks[2], (H, H)), "bq": rnd(ks[3], (1, H)),
        "wk": rnd(ks[4], (H, H)), "bk": rnd(ks[5], (1, H)),
        "wv": rnd(ks[6], (H, H)), "bv": rnd(ks[7], (1, H)),
        "wo": rnd(ks[8], (H, H)), "bo": rnd(ks[9], (1, H)),
        "ln2_w": rnd(ks[10], (1, H), 0.1) + 1.0,
        "ln2_b": rnd(ks[11], (1, H), 0.1),
        "w1": rnd(ks[12], (H, I)), "b1": rnd(ks[13], (1, I)),
        "w2": rnd(ks[14], (I, H)), "b2": rnd(ks[15], (1, H)),
    }

    x = jax.random.normal(jax.random.PRNGKey(42), (B, S, H), dtype=jnp.float32)

    prepared = prepare_params(params, num_heads=NUM_HEADS)
    out = wav2vec2_encoder_layer(x, prepared, num_heads=NUM_HEADS, eps=EPS, tq=8)
    out = jax.block_until_ready(out)

    ref = reference(x, params, num_heads=NUM_HEADS, eps=EPS)
    assert out.shape == (B, S, H)
    # bf16 matmuls / bf16 K-V-path input + approx softmax reciprocal ->
    # looser tolerance than pure f32
    assert jnp.allclose(out, ref, atol=2e-2, rtol=2e-2), (
        f"max abs err = {jnp.max(jnp.abs(out - ref))}"
    )

    print("KERNEL_OK")
</pallas_src>

<mosaic_0001>
module attributes {stable_mosaic.version = 11 : i64} {
  func.func @encoder_layer_kernel(%arg0: i32, %arg1: i32, %arg2: memref<1x8x32xf32, #tpu.memory_space<vmem>>, %arg3: memref<1x16x32xbf16, #tpu.memory_space<vmem>>, %arg4: memref<1x32xf32, #tpu.memory_space<vmem>>, %arg5: memref<1x32xf32, #tpu.memory_space<vmem>>, %arg6: memref<32x32xbf16, #tpu.memory_space<vmem>>, %arg7: memref<1x32xf32, #tpu.memory_space<vmem>>, %arg8: memref<32x32xbf16, #tpu.memory_space<vmem>>, %arg9: memref<1x32xf32, #tpu.memory_space<vmem>>, %arg10: memref<32x32xbf16, #tpu.memory_space<vmem>>, %arg11: memref<1x32xf32, #tpu.memory_space<vmem>>, %arg12: memref<32x32xbf16, #tpu.memory_space<vmem>>, %arg13: memref<1x32xf32, #tpu.memory_space<vmem>>, %arg14: memref<1x32xf32, #tpu.memory_space<vmem>>, %arg15: memref<1x32xf32, #tpu.memory_space<vmem>>, %arg16: memref<32x64xbf16, #tpu.memory_space<vmem>>, %arg17: memref<1x64xf32, #tpu.memory_space<vmem>>, %arg18: memref<64x32xbf16, #tpu.memory_space<vmem>>, %arg19: memref<1x32xf32, #tpu.memory_space<vmem>>, %arg20: memref<1x8x32xf32, #tpu.memory_space<vmem>>, %arg21: memref<16x32xbf16, #tpu.memory_space<vmem>>, %arg22: memref<16x32xbf16, #tpu.memory_space<vmem>>, %arg23: memref<8x32xbf16, #tpu.memory_space<vmem>>) attributes {dimension_semantics = [#tpu.dimension_semantics<parallel>, #tpu.dimension_semantics<arbitrary>], iteration_bounds = array<i64: 2, 2>, scalar_prefetch = 0 : i64, scratch_operands = 3 : i64, tpu.core_type = #tpu.core_type<tc>, window_params = [{transform_indices = @transform_0, window_bounds = array<i64: 1, 8, 32>}, {transform_indices = @transform_1, window_bounds = array<i64: 1, 16, 32>}, {pipeline_mode = #tpu.pipeline_mode<synchronous>, transform_indices = @transform_2, window_bounds = array<i64: 1, 32>}, {pipeline_mode = #tpu.pipeline_mode<synchronous>, transform_indices = @transform_3, window_bounds = array<i64: 1, 32>}, {pipeline_mode = #tpu.pipeline_mode<synchronous>, transform_indices = @transform_4, window_bounds = array<i64: 32, 32>}, {pipeline_mode = #tpu.pipeline_mode<synchronous>, transform_indices = @transform_5, window_bounds = array<i64: 1, 32>}, {pipeline_mode = #tpu.pipeline_mode<synchronous>, transform_indices = @transform_6, window_bounds = array<i64: 32, 32>}, {pipeline_mode = #tpu.pipeline_mode<synchronous>, transform_indices = @transform_7, window_bounds = array<i64: 1, 32>}, {pipeline_mode = #tpu.pipeline_mode<synchronous>, transform_indices = @transform_8, window_bounds = array<i64: 32, 32>}, {pipeline_mode = #tpu.pipeline_mode<synchronous>, transform_indices = @transform_9, window_bounds = array<i64: 1, 32>}, {pipeline_mode = #tpu.pipeline_mode<synchronous>, transform_indices = @transform_10, window_bounds = array<i64: 32, 32>}, {pipeline_mode = #tpu.pipeline_mode<synchronous>, transform_indices = @transform_11, window_bounds = array<i64: 1, 32>}, {pipeline_mode = #tpu.pipeline_mode<synchronous>, transform_indices = @transform_12, window_bounds = array<i64: 1, 32>}, {pipeline_mode = #tpu.pipeline_mode<synchronous>, transform_indices = @transform_13, window_bounds = array<i64: 1, 32>}, {pipeline_mode = #tpu.pipeline_mode<synchronous>, transform_indices = @transform_14, window_bounds = array<i64: 32, 64>}, {pipeline_mode = #tpu.pipeline_mode<synchronous>, transform_indices = @transform_15, window_bounds = array<i64: 1, 64>}, {pipeline_mode = #tpu.pipeline_mode<synchronous>, transform_indices = @transform_16, window_bounds = array<i64: 64, 32>}, {pipeline_mode = #tpu.pipeline_mode<synchronous>, transform_indices = @transform_17, window_bounds = array<i64: 1, 32>}, {transform_indices = @transform_18, window_bounds = array<i64: 1, 8, 32>}]} {
    %c0 = arith.constant 0 : index
    %c0_0 = arith.constant 0 : index
    %c0_1 = arith.constant 0 : index
    %0 = vector.load %arg2[%c0, %c0_0, %c0_1] : memref<1x8x32xf32, #tpu.memory_space<vmem>>, vector<1x8x32xf32>
    %1 = vector.shape_cast %0 : vector<1x8x32xf32> to vector<8x32xf32>
    %c0_2 = arith.constant 0 : index
    %c0_3 = arith.constant 0 : index
    %2 = vector.load %arg4[%c0_2, %c0_3] : memref<1x32xf32, #tpu.memory_space<vmem>>, vector<1x32xf32>
    %3 = vector.shape_cast %2 : vector<1x32xf32> to vector<32xf32>
    %c0_4 = arith.constant 0 : index
    %c0_5 = arith.constant 0 : index
    %4 = vector.load %arg5[%c0_4, %c0_5] : memref<1x32xf32, #tpu.memory_space<vmem>>, vector<1x32xf32>
    %5 = vector.shape_cast %4 : vector<1x32xf32> to vector<32xf32>
    %c0_i32 = arith.constant 0 : i32
    %6 = arith.cmpi eq, %arg1, %c0_i32 : i32
    %7 = arith.extui %6 : i1 to i32
    %c0_i32_6 = arith.constant 0 : i32
    %8 = arith.cmpi ne, %7, %c0_i32_6 : i32
    scf.if %8 {
      %c0_86 = arith.constant 0 : index
      %c0_87 = arith.constant 0 : index
      %c0_88 = arith.constant 0 : index
      %190 = vector.load %arg3[%c0_86, %c0_87, %c0_88] : memref<1x16x32xbf16, #tpu.memory_space<vmem>>, vector<1x16x32xbf16>
      %191 = vector.shape_cast %190 : vector<1x16x32xbf16> to vector<16x32xbf16>
      %192 = arith.extf %191 : vector<16x32xbf16> to vector<16x32xf32>
      %cst_89 = arith.constant dense<0.000000e+00> : vector<16xf32>
      %193 = vector.multi_reduction <add>, %192, %cst_89 [1] : vector<16x32xf32> to vector<16xf32>
      %194 = vector.shape_cast %193 : vector<16xf32> to vector<16x1xf32>
      %cst_90 = arith.constant 3.200000e+01 : f32
      %195 = vector.broadcast %cst_90 : f32 to vector<16x1xf32>
      %196 = arith.divf %194, %195 : vector<16x1xf32>
      %197 = vector.broadcast %196 : vector<16x1xf32> to vector<16x32xf32>
      %198 = arith.subf %192, %197 : vector<16x32xf32>
      %199 = arith.mulf %198, %198 : vector<16x32xf32>
      %cst_91 = arith.constant dense<0.000000e+00> : vector<16xf32>
      %200 = vector.multi_reduction <add>, %199, %cst_91 [1] : vector<16x32xf32> to vector<16xf32>
      %201 = vector.shape_cast %200 : vector<16xf32> to vector<16x1xf32>
      %cst_92 = arith.constant 3.200000e+01 : f32
      %202 = vector.broadcast %cst_92 : f32 to vector<16x1xf32>
      %203 = arith.divf %201, %202 : vector<16x1xf32>
      %204 = vector.broadcast %196 : vector<16x1xf32> to vector<16x32xf32>
      %205 = arith.subf %192, %204 : vector<16x32xf32>
      %cst_93 = arith.constant 9.99999974E-6 : f32
      %206 = vector.broadcast %cst_93 : f32 to vector<16x1xf32>
      %207 = arith.addf %203, %206 : vector<16x1xf32>
      %208 = math.rsqrt %207 : vector<16x1xf32>
      %209 = vector.broadcast %208 : vector<16x1xf32> to vector<16x32xf32>
      %210 = arith.mulf %205, %209 : vector<16x32xf32>
      %211 = vector.shape_cast %3 : vector<32xf32> to vector<1x32xf32>
      %212 = vector.broadcast %211 : vector<1x32xf32> to vector<16x32xf32>
      %213 = arith.mulf %210, %212 : vector<16x32xf32>
      %214 = vector.shape_cast %5 : vector<32xf32> to vector<1x32xf32>
      %215 = vector.broadcast %214 : vector<1x32xf32> to vector<16x32xf32>
      %216 = arith.addf %213, %215 : vector<16x32xf32>
      %217 = arith.truncf %216 : vector<16x32xf32> to vector<16x32xbf16>
      %c0_94 = arith.constant 0 : index
      %c0_95 = arith.constant 0 : index
      %218 = vector.load %arg8[%c0_94, %c0_95] : memref<32x32xbf16, #tpu.memory_space<vmem>>, vector<32x32xbf16>
      %cst_96 = arith.constant dense<0.000000e+00> : vector<16x32xf32>
      %219 = tpu.matmul %217, %218, %cst_96 {dimension_numbers = #tpu.dot_dimension_numbers<[1], [0], [0], [1], [0, 0, 1, 1], [], []>} : vector<16x32xbf16>, vector<32x32xbf16>, vector<16x32xf32> -> vector<16x32xf32>
      %c0_97 = arith.constant 0 : index
      %c0_98 = arith.constant 0 : index
      %220 = vector.load %arg9[%c0_97, %c0_98] : memref<1x32xf32, #tpu.memory_space<vmem>>, vector<1x32xf32>
      %221 = vector.shape_cast %220 : vector<1x32xf32> to vector<32xf32>
      %222 = vector.shape_cast %221 : vector<32xf32> to vector<1x32xf32>
      %223 = vector.broadcast %222 : vector<1x32xf32> to vector<16x32xf32>
      %224 = arith.addf %219, %223 : vector<16x32xf32>
      %c0_99 = arith.constant 0 : index
      %c0_100 = arith.constant 0 : index
      %225 = vector.load %arg10[%c0_99, %c0_100] : memref<32x32xbf16, #tpu.memory_space<vmem>>, vector<32x32xbf16>
      %cst_101 = arith.constant dense<0.000000e+00> : vector<16x32xf32>
      %226 = tpu.matmul %217, %225, %cst_101 {dimension_numbers = #tpu.dot_dimension_numbers<[1], [0], [0], [1], [0, 0, 1, 1], [], []>} : vector<16x32xbf16>, vector<32x32xbf16>, vector<16x32xf32> -> vector<16x32xf32>
      %c0_102 = arith.constant 0 : index
      %c0_103 = arith.constant 0 : index
      %227 = vector.load %arg11[%c0_102, %c0_103] : memref<1x32xf32, #tpu.memory_space<vmem>>, vector<1x32xf32>
      %228 = vector.shape_cast %227 : vector<1x32xf32> to vector<32xf32>
      %229 = vector.shape_cast %228 : vector<32xf32> to vector<1x32xf32>
      %230 = vector.broadcast %229 : vector<1x32xf32> to vector<16x32xf32>
      %231 = arith.addf %226, %230 : vector<16x32xf32>
      %232 = arith.truncf %224 : vector<16x32xf32> to vector<16x32xbf16>
      %c0_104 = arith.constant 0 : index
      %c0_105 = arith.constant 0 : index
      %233 = vector.load %arg21[%c0_104, %c0_105] : memref<16x32xbf16, #tpu.memory_space<vmem>>, vector<16x32xbf16>
      tpu.vector_store %arg21[%c0_104, %c0_105], %232 {strides = array<i32>} : memref<16x32xbf16, #tpu.memory_space<vmem>>, vector<16x32xbf16>,
      %234 = arith.truncf %231 : vector<16x32xf32> to vector<16x32xbf16>
      %c0_106 = arith.constant 0 : index
      %c0_107 = arith.constant 0 : index
      %235 = vector.load %arg22[%c0_106, %c0_107] : memref<16x32xbf16, #tpu.memory_space<vmem>>, vector<16x32xbf16>
      tpu.vector_store %arg22[%c0_106, %c0_107], %234 {strides = array<i32>} : memref<16x32xbf16, #tpu.memory_space<vmem>>, vector<16x32xbf16>,
    } else {
    }
    %cst = arith.constant dense<0.000000e+00> : vector<8xf32>
    %9 = vector.multi_reduction <add>, %1, %cst [1] : vector<8x32xf32> to vector<8xf32>
    %10 = vector.shape_cast %9 : vector<8xf32> to vector<8x1xf32>
    %cst_7 = arith.constant 3.200000e+01 : f32
    %11 = vector.broadcast %cst_7 : f32 to vector<8x1xf32>
    %12 = arith.divf %10, %11 : vector<8x1xf32>
    %13 = vector.broadcast %12 : vector<8x1xf32> to vector<8x32xf32>
    %14 = arith.subf %1, %13 : vector<8x32xf32>
    %15 = arith.mulf %14, %14 : vector<8x32xf32>
    %cst_8 = arith.constant dense<0.000000e+00> : vector<8xf32>
    %16 = vector.multi_reduction <add>, %15, %cst_8 [1] : vector<8x32xf32> to vector<8xf32>
    %17 = vector.shape_cast %16 : vector<8xf32> to vector<8x1xf32>
    %cst_9 = arith.constant 3.200000e+01 : f32
    %18 = vector.broadcast %cst_9 : f32 to vector<8x1xf32>
    %19 = arith.divf %17, %18 : vector<8x1xf32>
    %20 = vector.broadcast %12 : vector<8x1xf32> to vector<8x32xf32>
    %21 = arith.subf %1, %20 : vector<8x32xf32>
    %cst_10 = arith.constant 9.99999974E-6 : f32
    %22 = vector.broadcast %cst_10 : f32 to vector<8x1xf32>
    %23 = arith.addf %19, %22 : vector<8x1xf32>
    %24 = math.rsqrt %23 : vector<8x1xf32>
    %25 = vector.broadcast %24 : vector<8x1xf32> to vector<8x32xf32>
    %26 = arith.mulf %21, %25 : vector<8x32xf32>
    %27 = vector.shape_cast %3 : vector<32xf32> to vector<1x32xf32>
    %28 = vector.broadcast %27 : vector<1x32xf32> to vector<8x32xf32>
    %29 = arith.mulf %26, %28 : vector<8x32xf32>
    %30 = vector.shape_cast %5 : vector<32xf32> to vector<1x32xf32>
    %31 = vector.broadcast %30 : vector<1x32xf32> to vector<8x32xf32>
    %32 = arith.addf %29, %31 : vector<8x32xf32>
    %33 = arith.truncf %32 : vector<8x32xf32> to vector<8x32xbf16>
    %c0_11 = arith.constant 0 : index
    %c0_12 = arith.constant 0 : index
    %34 = vector.load %arg6[%c0_11, %c0_12] : memref<32x32xbf16, #tpu.memory_space<vmem>>, vector<32x32xbf16>
    %cst_13 = arith.constant dense<0.000000e+00> : vector<8x32xf32>
    %35 = tpu.matmul %33, %34, %cst_13 {dimension_numbers = #tpu.dot_dimension_numbers<[1], [0], [0], [1], [0, 0, 1, 1], [], []>} : vector<8x32xbf16>, vector<32x32xbf16>, vector<8x32xf32> -> vector<8x32xf32>
    %c0_14 = arith.constant 0 : index
    %c0_15 = arith.constant 0 : index
    %36 = vector.load %arg7[%c0_14, %c0_15] : memref<1x32xf32, #tpu.memory_space<vmem>>, vector<1x32xf32>
    %37 = vector.shape_cast %36 : vector<1x32xf32> to vector<32xf32>
    %38 = vector.shape_cast %37 : vector<32xf32> to vector<1x32xf32>
    %39 = vector.broadcast %38 : vector<1x32xf32> to vector<8x32xf32>
    %40 = arith.addf %35, %39 : vector<8x32xf32>
    %41 = arith.truncf %40 : vector<8x32xf32> to vector<8x32xbf16>
    %42 = tpu.iota {dimensions = array<i32: 1>} : vector<8x16xi32>
    %c12_i32 = arith.constant 12 : i32
    %43 = vector.broadcast %c12_i32 : i32 to vector<8x16xi32>
    %44 = arith.cmpi slt, %42, %43 : vector<8x16xi32>
    %45 = vector.extract_strided_slice %41 {offsets = [0, 0], sizes = [8, 8], strides = [1, 1]} : vector<8x32xbf16> to vector<8x8xbf16>
    %c0_16 = arith.constant 0 : index
    %c0_17 = arith.constant 0 : index
    %46 = vector.load %arg21[%c0_16, %c0_17] : memref<16x32xbf16, #tpu.memory_space<vmem>>, vector<16x8xbf16>
    %cst_18 = arith.constant dense<0.000000e+00> : vector<8x16xf32>
    %47 = tpu.matmul %45, %46, %cst_18 {dimension_numbers = #tpu.dot_dimension_numbers<[1], [1], [0], [0], [0, 0, 1, 0], [], []>} : vector<8x8xbf16>, vector<16x8xbf16>, vector<8x16xf32> -> vector<8x16xf32>
    %cst_19 = arith.constant -1.000000e+30 : f32
    %48 = vector.broadcast %cst_19 : f32 to vector<8x16xf32>
    %49 = arith.select %44, %47, %48 : vector<8x16xi1>, vector<8x16xf32>
    %cst_20 = arith.constant dense<0xFF800000> : vector<8xf32>
    %50 = vector.multi_reduction <maximumf>, %49, %cst_20 [1] : vector<8x16xf32> to vector<8xf32>
    %51 = vector.shape_cast %50 : vector<8xf32> to vector<8x1xf32>
    %52 = vector.broadcast %51 : vector<8x1xf32> to vector<8x16xf32>
    %53 = arith.subf %49, %52 : vector<8x16xf32>
    %54 = math.exp %53 : vector<8x16xf32>
    %cst_21 = arith.constant dense<0.000000e+00> : vector<8xf32>
    %55 = vector.multi_reduction <add>, %54, %cst_21 [1] : vector<8x16xf32> to vector<8xf32>
    %56 = vector.shape_cast %55 : vector<8xf32> to vector<8x1xf32>
    %57 = arith.truncf %54 : vector<8x16xf32> to vector<8x16xbf16>
    %c0_22 = arith.constant 0 : index
    %c0_23 = arith.constant 0 : index
    %58 = vector.load %arg22[%c0_22, %c0_23] : memref<16x32xbf16, #tpu.memory_space<vmem>>, vector<16x8xbf16>
    %cst_24 = arith.constant dense<0.000000e+00> : vector<8x8xf32>
    %59 = tpu.matmul %57, %58, %cst_24 {dimension_numbers = #tpu.dot_dimension_numbers<[1], [0], [0], [1], [0, 0, 1, 1], [], []>} : vector<8x16xbf16>, vector<16x8xbf16>, vector<8x8xf32> -> vector<8x8xf32>
    %60 = tpu.reciprocal %56 {approx = true} : vector<8x1xf32> -> vector<8x1xf32>
    %61 = vector.broadcast %60 : vector<8x1xf32> to vector<8x8xf32>
    %62 = arith.mulf %59, %61 : vector<8x8xf32>
    %63 = vector.extract_strided_slice %41 {offsets = [0, 8], sizes = [8, 8], strides = [1, 1]} : vector<8x32xbf16> to vector<8x8xbf16>
    %c0_25 = arith.constant 0 : index
    %c8 = arith.constant 8 : index
    %64 = vector.load %arg21[%c0_25, %c8] : memref<16x32xbf16, #tpu.memory_space<vmem>>, vector<16x8xbf16>
    %cst_26 = arith.constant dense<0.000000e+00> : vector<8x16xf32>
    %65 = tpu.matmul %63, %64, %cst_26 {dimension_numbers = #tpu.dot_dimension_numbers<[1], [1], [0], [0], [0, 0, 1, 0], [], []>} : vector<8x8xbf16>, vector<16x8xbf16>, vector<8x16xf32> -> vector<8x16xf32>
    %cst_27 = arith.constant -1.000000e+30 : f32
    %66 = vector.broadcast %cst_27 : f32 to vector<8x16xf32>
    %67 = arith.select %44, %65, %66 : vector<8x16xi1>, vector<8x16xf32>
    %cst_28 = arith.constant dense<0xFF800000> : vector<8xf32>
    %68 = vector.multi_reduction <maximumf>, %67, %cst_28 [1] : vector<8x16xf32> to vector<8xf32>
    %69 = vector.shape_cast %68 : vector<8xf32> to vector<8x1xf32>
    %70 = vector.broadcast %69 : vector<8x1xf32> to vector<8x16xf32>
    %71 = arith.subf %67, %70 : vector<8x16xf32>
    %72 = math.exp %71 : vector<8x16xf32>
    %cst_29 = arith.constant dense<0.000000e+00> : vector<8xf32>
    %73 = vector.multi_reduction <add>, %72, %cst_29 [1] : vector<8x16xf32> to vector<8xf32>
    %74 = vector.shape_cast %73 : vector<8xf32> to vector<8x1xf32>
    %75 = arith.truncf %72 : vector<8x16xf32> to vector<8x16xbf16>
    %c0_30 = arith.constant 0 : index
    %c8_31 = arith.constant 8 : index
    %76 = vector.load %arg22[%c0_30, %c8_31] : memref<16x32xbf16, #tpu.memory_space<vmem>>, vector<16x8xbf16>
    %cst_32 = arith.constant dense<0.000000e+00> : vector<8x8xf32>
    %77 = tpu.matmul %75, %76, %cst_32 {dimension_numbers = #tpu.dot_dimension_numbers<[1], [0], [0], [1], [0, 0, 1, 1], [], []>} : vector<8x16xbf16>, vector<16x8xbf16>, vector<8x8xf32> -> vector<8x8xf32>
    %78 = tpu.reciprocal %74 {approx = true} : vector<8x1xf32> -> vector<8x1xf32>
    %79 = vector.broadcast %78 : vector<8x1xf32> to vector<8x8xf32>
    %80 = arith.mulf %77, %79 : vector<8x8xf32>
    %81 = tpu.concatenate %62, %80 in 1 : vector<8x8xf32>, vector<8x8xf32> -> vector<8x16xf32>
    %82 = arith.truncf %81 : vector<8x16xf32> to vector<8x16xbf16>
    %c0_33 = arith.constant 0 : index
    %c0_34 = arith.constant 0 : index
    %83 = vector.load %arg23[%c0_33, %c0_34] : memref<8x32xbf16, #tpu.memory_space<vmem>>, vector<8x16xbf16>
    tpu.vector_store %arg23[%c0_33, %c0_34], %82 {strides = array<i32>} : memref<8x32xbf16, #tpu.memory_space<vmem>>, vector<8x16xbf16>,
    %84 = vector.extract_strided_slice %41 {offsets = [0, 16], sizes = [8, 8], strides = [1, 1]} : vector<8x32xbf16> to vector<8x8xbf16>
    %c0_35 = arith.constant 0 : index
    %c16 = arith.constant 16 : index
    %85 = vector.load %arg21[%c0_35, %c16] : memref<16x32xbf16, #tpu.memory_space<vmem>>, vector<16x8xbf16>
    %cst_36 = arith.constant dense<0.000000e+00> : vector<8x16xf32>
    %86 = tpu.matmul %84, %85, %cst_36 {dimension_numbers = #tpu.dot_dimension_numbers<[1], [1], [0], [0], [0, 0, 1, 0], [], []>} : vector<8x8xbf16>, vector<16x8xbf16>, vector<8x16xf32> -> vector<8x16xf32>
    %cst_37 = arith.constant -1.000000e+30 : f32
    %87 = vector.broadcast %cst_37 : f32 to vector<8x16xf32>
    %88 = arith.select %44, %86, %87 : vector<8x16xi1>, vector<8x16xf32>
    %cst_38 = arith.constant dense<0xFF800000> : vector<8xf32>
    %89 = vector.multi_reduction <maximumf>, %88, %cst_38 [1] : vector<8x16xf32> to vector<8xf32>
    %90 = vector.shape_cast %89 : vector<8xf32> to vector<8x1xf32>
    %91 = vector.broadcast %90 : vector<8x1xf32> to vector<8x16xf32>
    %92 = arith.subf %88, %91 : vector<8x16xf32>
    %93 = math.exp %92 : vector<8x16xf32>
    %cst_39 = arith.constant dense<0.000000e+00> : vector<8xf32>
    %94 = vector.multi_reduction <add>, %93, %cst_39 [1] : vector<8x16xf32> to vector<8xf32>
    %95 = vector.shape_cast %94 : vector<8xf32> to vector<8x1xf32>
    %96 = arith.truncf %93 : vector<8x16xf32> to vector<8x16xbf16>
    %c0_40 = arith.constant 0 : index
    %c16_41 = arith.constant 16 : index
    %97 = vector.load %arg22[%c0_40, %c16_41] : memref<16x32xbf16, #tpu.memory_space<vmem>>, vector<16x8xbf16>
    %cst_42 = arith.constant dense<0.000000e+00> : vector<8x8xf32>
    %98 = tpu.matmul %96, %97, %cst_42 {dimension_numbers = #tpu.dot_dimension_numbers<[1], [0], [0], [1], [0, 0, 1, 1], [], []>} : vector<8x16xbf16>, vector<16x8xbf16>, vector<8x8xf32> -> vector<8x8xf32>
    %99 = tpu.reciprocal %95 {approx = true} : vector<8x1xf32> -> vector<8x1xf32>
    %100 = vector.broadcast %99 : vector<8x1xf32> to vector<8x8xf32>
    %101 = arith.mulf %98, %100 : vector<8x8xf32>
    %102 = vector.extract_strided_slice %41 {offsets = [0, 24], sizes = [8, 8], strides = [1, 1]} : vector<8x32xbf16> to vector<8x8xbf16>
    %c0_43 = arith.constant 0 : index
    %c24 = arith.constant 24 : index
    %103 = vector.load %arg21[%c0_43, %c24] : memref<16x32xbf16, #tpu.memory_space<vmem>>, vector<16x8xbf16>
    %cst_44 = arith.constant dense<0.000000e+00> : vector<8x16xf32>
    %104 = tpu.matmul %102, %103, %cst_44 {dimension_numbers = #tpu.dot_dimension_numbers<[1], [1], [0], [0], [0, 0, 1, 0], [], []>} : vector<8x8xbf16>, vector<16x8xbf16>, vector<8x16xf32> -> vector<8x16xf32>
    %cst_45 = arith.constant -1.000000e+30 : f32
    %105 = vector.broadcast %cst_45 : f32 to vector<8x16xf32>
    %106 = arith.select %44, %104, %105 : vector<8x16xi1>, vector<8x16xf32>
    %cst_46 = arith.constant dense<0xFF800000> : vector<8xf32>
    %107 = vector.multi_reduction <maximumf>, %106, %cst_46 [1] : vector<8x16xf32> to vector<8xf32>
    %108 = vector.shape_cast %107 : vector<8xf32> to vector<8x1xf32>
    %109 = vector.broadcast %108 : vector<8x1xf32> to vector<8x16xf32>
    %110 = arith.subf %106, %109 : vector<8x16xf32>
    %111 = math.exp %110 : vector<8x16xf32>
    %cst_47 = arith.constant dense<0.000000e+00> : vector<8xf32>
    %112 = vector.multi_reduction <add>, %111, %cst_47 [1] : vector<8x16xf32> to vector<8xf32>
    %113 = vector.shape_cast %112 : vector<8xf32> to vector<8x1xf32>
    %114 = arith.truncf %111 : vector<8x16xf32> to vector<8x16xbf16>
    %c0_48 = arith.constant 0 : index
    %c24_49 = arith.constant 24 : index
    %115 = vector.load %arg22[%c0_48, %c24_49] : memref<16x32xbf16, #tpu.memory_space<vmem>>, vector<16x8xbf16>
    %cst_50 = arith.constant dense<0.000000e+00> : vector<8x8xf32>
    %116 = tpu.matmul %114, %115, %cst_50 {dimension_numbers = #tpu.dot_dimension_numbers<[1], [0], [0], [1], [0, 0, 1, 1], [], []>} : vector<8x16xbf16>, vector<16x8xbf16>, vector<8x8xf32> -> vector<8x8xf32>
    %117 = tpu.reciprocal %113 {approx = true} : vector<8x1xf32> -> vector<8x1xf32>
    %118 = vector.broadcast %117 : vector<8x1xf32> to vector<8x8xf32>
    %119 = arith.mulf %116, %118 : vector<8x8xf32>
    %120 = tpu.concatenate %101, %119 in 1 : vector<8x8xf32>, vector<8x8xf32> -> vector<8x16xf32>
    %121 = arith.truncf %120 : vector<8x16xf32> to vector<8x16xbf16>
    %c0_51 = arith.constant 0 : index
    %c16_52 = arith.constant 16 : index
    %122 = vector.load %arg23[%c0_51, %c16_52] : memref<8x32xbf16, #tpu.memory_space<vmem>>, vector<8x16xbf16>
    tpu.vector_store %arg23[%c0_51, %c16_52], %121 {strides = array<i32>} : memref<8x32xbf16, #tpu.memory_space<vmem>>, vector<8x16xbf16>,
    %c0_53 = arith.constant 0 : index
    %c0_54 = arith.constant 0 : index
    %123 = vector.load %arg23[%c0_53, %c0_54] : memref<8x32xbf16, #tpu.memory_space<vmem>>, vector<8x32xbf16>
    %c0_55 = arith.constant 0 : index
    %c0_56 = arith.constant 0 : index
    %124 = vector.load %arg12[%c0_55, %c0_56] : memref<32x32xbf16, #tpu.memory_space<vmem>>, vector<32x32xbf16>
    %cst_57 = arith.constant dense<0.000000e+00> : vector<8x32xf32>
    %125 = tpu.matmul %123, %124, %cst_57 {dimension_numbers = #tpu.dot_dimension_numbers<[1], [0], [0], [1], [0, 0, 1, 1], [], []>} : vector<8x32xbf16>, vector<32x32xbf16>, vector<8x32xf32> -> vector<8x32xf32>
    %c0_58 = arith.constant 0 : index
    %c0_59 = arith.constant 0 : index
    %126 = vector.load %arg13[%c0_58, %c0_59] : memref<1x32xf32, #tpu.memory_space<vmem>>, vector<1x32xf32>
    %127 = vector.shape_cast %126 : vector<1x32xf32> to vector<32xf32>
    %128 = vector.shape_cast %127 : vector<32xf32> to vector<1x32xf32>
    %129 = vector.broadcast %128 : vector<1x32xf32> to vector<8x32xf32>
    %130 = arith.addf %125, %129 : vector<8x32xf32>
    %131 = arith.addf %1, %130 : vector<8x32xf32>
    %c0_60 = arith.constant 0 : index
    %c0_61 = arith.constant 0 : index
    %132 = vector.load %arg14[%c0_60, %c0_61] : memref<1x32xf32, #tpu.memory_space<vmem>>, vector<1x32xf32>
    %133 = vector.shape_cast %132 : vector<1x32xf32> to vector<32xf32>
    %c0_62 = arith.constant 0 : index
    %c0_63 = arith.constant 0 : index
    %134 = vector.load %arg15[%c0_62, %c0_63] : memref<1x32xf32, #tpu.memory_space<vmem>>, vector<1x32xf32>
    %135 = vector.shape_cast %134 : vector<1x32xf32> to vector<32xf32>
    %cst_64 = arith.constant dense<0.000000e+00> : vector<8xf32>
    %136 = vector.multi_reduction <add>, %131, %cst_64 [1] : vector<8x32xf32> to vector<8xf32>
    %137 = vector.shape_cast %136 : vector<8xf32> to vector<8x1xf32>
    %cst_65 = arith.constant 3.200000e+01 : f32
    %138 = vector.broadcast %cst_65 : f32 to vector<8x1xf32>
    %139 = arith.divf %137, %138 : vector<8x1xf32>
    %140 = vector.broadcast %139 : vector<8x1xf32> to vector<8x32xf32>
    %141 = arith.subf %131, %140 : vector<8x32xf32>
    %142 = arith.mulf %141, %141 : vector<8x32xf32>
    %cst_66 = arith.constant dense<0.000000e+00> : vector<8xf32>
    %143 = vector.multi_reduction <add>, %142, %cst_66 [1] : vector<8x32xf32> to vector<8xf32>
    %144 = vector.shape_cast %143 : vector<8xf32> to vector<8x1xf32>
    %cst_67 = arith.constant 3.200000e+01 : f32
    %145 = vector.broadcast %cst_67 : f32 to vector<8x1xf32>
    %146 = arith.divf %144, %145 : vector<8x1xf32>
    %147 = vector.broadcast %139 : vector<8x1xf32> to vector<8x32xf32>
    %148 = arith.subf %131, %147 : vector<8x32xf32>
    %cst_68 = arith.constant 9.99999974E-6 : f32
    %149 = vector.broadcast %cst_68 : f32 to vector<8x1xf32>
    %150 = arith.addf %146, %149 : vector<8x1xf32>
    %151 = math.rsqrt %150 : vector<8x1xf32>
    %152 = vector.broadcast %151 : vector<8x1xf32> to vector<8x32xf32>
    %153 = arith.mulf %148, %152 : vector<8x32xf32>
    %154 = vector.shape_cast %133 : vector<32xf32> to vector<1x32xf32>
    %155 = vector.broadcast %154 : vector<1x32xf32> to vector<8x32xf32>
    %156 = arith.mulf %153, %155 : vector<8x32xf32>
    %157 = vector.shape_cast %135 : vector<32xf32> to vector<1x32xf32>
    %158 = vector.broadcast %157 : vector<1x32xf32> to vector<8x32xf32>
    %159 = arith.addf %156, %158 : vector<8x32xf32>
    %160 = arith.truncf %159 : vector<8x32xf32> to vector<8x32xbf16>
    %cst_69 = arith.constant 0.000000e+00 : f32
    %161 = vector.broadcast %cst_69 : f32 to vector<8x32xf32>
    %c0_70 = arith.constant 0 : index
    %c0_71 = arith.constant 0 : index
    %162 = vector.load %arg16[%c0_70, %c0_71] : memref<32x64xbf16, #tpu.memory_space<vmem>>, vector<32x64xbf16>
    %cst_72 = arith.constant dense<0.000000e+00> : vector<8x64xf32>
    %163 = tpu.matmul %160, %162, %cst_72 {dimension_numbers = #tpu.dot_dimension_numbers<[1], [0], [0], [1], [0, 0, 1, 1], [], []>} : vector<8x32xbf16>, vector<32x64xbf16>, vector<8x64xf32> -> vector<8x64xf32>
    %c0_73 = arith.constant 0 : index
    %c0_74 = arith.constant 0 : index
    %164 = vector.load %arg17[%c0_73, %c0_74] : memref<1x64xf32, #tpu.memory_space<vmem>>, vector<1x64xf32>
    %165 = vector.shape_cast %164 : vector<1x64xf32> to vector<64xf32>
    %166 = vector.shape_cast %165 : vector<64xf32> to vector<1x64xf32>
    %167 = vector.broadcast %166 : vector<1x64xf32> to vector<8x64xf32>
    %168 = arith.addf %163, %167 : vector<8x64xf32>
    %cst_75 = arith.constant 5.000000e-01 : f32
    %169 = vector.broadcast %cst_75 : f32 to vector<8x64xf32>
    %170 = arith.mulf %169, %168 : vector<8x64xf32>
    %cst_76 = arith.constant 0.707106769 : f32
    %171 = vector.broadcast %cst_76 : f32 to vector<8x64xf32>
    %172 = arith.mulf %168, %171 : vector<8x64xf32>
    %173 = math.erf %172 : vector<8x64xf32>
    %cst_77 = arith.constant 1.000000e+00 : f32
    %174 = vector.broadcast %cst_77 : f32 to vector<8x64xf32>
    %175 = arith.addf %174, %173 : vector<8x64xf32>
    %176 = arith.mulf %170, %175 : vector<8x64xf32>
    %177 = arith.truncf %176 : vector<8x64xf32> to vector<8x64xbf16>
    %c0_78 = arith.constant 0 : index
    %c0_79 = arith.constant 0 : index
    %178 = vector.load %arg18[%c0_78, %c0_79] : memref<64x32xbf16, #tpu.memory_space<vmem>>, vector<64x32xbf16>
    %cst_80 = arith.constant dense<0.000000e+00> : vector<8x32xf32>
    %179 = tpu.matmul %177, %178, %cst_80 {dimension_numbers = #tpu.dot_dimension_numbers<[1], [0], [0], [1], [0, 0, 1, 1], [], []>} : vector<8x64xbf16>, vector<64x32xbf16>, vector<8x32xf32> -> vector<8x32xf32>
    %180 = arith.addf %161, %179 : vector<8x32xf32>
    %c0_81 = arith.constant 0 : index
    %c0_82 = arith.constant 0 : index
    %181 = vector.load %arg19[%c0_81, %c0_82] : memref<1x32xf32, #tpu.memory_space<vmem>>, vector<1x32xf32>
    %182 = vector.shape_cast %181 : vector<1x32xf32> to vector<32xf32>
    %183 = vector.shape_cast %182 : vector<32xf32> to vector<1x32xf32>
    %184 = vector.broadcast %183 : vector<1x32xf32> to vector<8x32xf32>
    %185 = arith.addf %180, %184 : vector<8x32xf32>
    %186 = arith.addf %131, %185 : vector<8x32xf32>
    %c0_83 = arith.constant 0 : index
    %c0_84 = arith.constant 0 : index
    %c0_85 = arith.constant 0 : index
    %187 = vector.load %arg20[%c0_83, %c0_84, %c0_85] : memref<1x8x32xf32, #tpu.memory_space<vmem>>, vector<1x8x32xf32>
    %188 = vector.shape_cast %187 : vector<1x8x32xf32> to vector<8x32xf32>
    %189 = vector.shape_cast %186 : vector<8x32xf32> to vector<1x8x32xf32>
    tpu.vector_store %arg20[%c0_83, %c0_84, %c0_85], %189 {strides = array<i32>} : memref<1x8x32xf32, #tpu.memory_space<vmem>>, vector<1x8x32xf32>,
    return
  }
  func.func @transform_0(%arg0: i32, %arg1: i32) -> (i32, i32, i32) {
    %c0_i32 = arith.constant 0 : i32
    %c0_i32_0 = arith.constant 0 : i32
    return %arg0, %arg1, %c0_i32 : i32, i32, i32
  }
  func.func @transform_1(%arg0: i32, %arg1: i32) -> (i32, i32, i32) {
    %c0_i32 = arith.constant 0 : i32
    %c0_i32_0 = arith.constant 0 : i32
    %c0_i32_1 = arith.constant 0 : i32
    return %arg0, %c0_i32, %c0_i32_0 : i32, i32, i32
  }
  func.func @transform_2(%arg0: i32, %arg1: i32) -> (i32, i32) {
    %c0_i32 = arith.constant 0 : i32
    %c0_i32_0 = arith.constant 0 : i32
    %c0_i32_1 = arith.constant 0 : i32
    return %c0_i32, %c0_i32_0 : i32, i32
  }
  func.func @transform_3(%arg0: i32, %arg1: i32) -> (i32, i32) {
    %c0_i32 = arith.constant 0 : i32
    %c0_i32_0 = arith.constant 0 : i32
    %c0_i32_1 = arith.constant 0 : i32
    return %c0_i32, %c0_i32_0 : i32, i32
  }
  func.func @transform_4(%arg0: i32, %arg1: i32) -> (i32, i32) {
    %c0_i32 = arith.constant 0 : i32
    %c0_i32_0 = arith.constant 0 : i32
    %c0_i32_1 = arith.constant 0 : i32
    return %c0_i32, %c0_i32_0 : i32, i32
  }
  func.func @transform_5(%arg0: i32, %arg1: i32) -> (i32, i32) {
    %c0_i32 = arith.constant 0 : i32
    %c0_i32_0 = arith.constant 0 : i32
    %c0_i32_1 = arith.constant 0 : i32
    return %c0_i32, %c0_i32_0 : i32, i32
  }
  func.func @transform_6(%arg0: i32, %arg1: i32) -> (i32, i32) {
    %c0_i32 = arith.constant 0 : i32
    %c0_i32_0 = arith.constant 0 : i32
    %c0_i32_1 = arith.constant 0 : i32
    return %c0_i32, %c0_i32_0 : i32, i32
  }
  func.func @transform_7(%arg0: i32, %arg1: i32) -> (i32, i32) {
    %c0_i32 = arith.constant 0 : i32
    %c0_i32_0 = arith.constant 0 : i32
    %c0_i32_1 = arith.constant 0 : i32
    return %c0_i32, %c0_i32_0 : i32, i32
  }
  func.func @transform_8(%arg0: i32, %arg1: i32) -> (i32, i32) {
    %c0_i32 = arith.constant 0 : i32
    %c0_i32_0 = arith.constant 0 : i32
    %c0_i32_1 = arith.constant 0 : i32
    return %c0_i32, %c0_i32_0 : i32, i32
  }
  func.func @transform_9(%arg0: i32, %arg1: i32) -> (i32, i32) {
    %c0_i32 = arith.constant 0 : i32
    %c0_i32_0 = arith.constant 0 : i32
    %c0_i32_1 = arith.constant 0 : i32
    return %c0_i32, %c0_i32_0 : i32, i32
  }
  func.func @transform_10(%arg0: i32, %arg1: i32) -> (i32, i32) {
    %c0_i32 = arith.constant 0 : i32
    %c0_i32_0 = arith.constant 0 : i32
    %c0_i32_1 = arith.constant 0 : i32
    return %c0_i32, %c0_i32_0 : i32, i32
  }
  func.func @transform_11(%arg0: i32, %arg1: i32) -> (i32, i32) {
    %c0_i32 = arith.constant 0 : i32
    %c0_i32_0 = arith.constant 0 : i32
    %c0_i32_1 = arith.constant 0 : i32
    return %c0_i32, %c0_i32_0 : i32, i32
  }
  func.func @transform_12(%arg0: i32, %arg1: i32) -> (i32, i32) {
    %c0_i32 = arith.constant 0 : i32
    %c0_i32_0 = arith.constant 0 : i32
    %c0_i32_1 = arith.constant 0 : i32
    return %c0_i32, %c0_i32_0 : i32, i32
  }
  func.func @transform_13(%arg0: i32, %arg1: i32) -> (i32, i32) {
    %c0_i32 = arith.constant 0 : i32
    %c0_i32_0 = arith.constant 0 : i32
    %c0_i32_1 = arith.constant 0 : i32
    return %c0_i32, %c0_i32_0 : i32, i32
  }
  func.func @transform_14(%arg0: i32, %arg1: i32) -> (i32, i32) {
    %c0_i32 = arith.constant 0 : i32
    %c0_i32_0 = arith.constant 0 : i32
    %c0_i32_1 = arith.constant 0 : i32
    return %c0_i32, %c0_i32_0 : i32, i32
  }
  func.func @transform_15(%arg0: i32, %arg1: i32) -> (i32, i32) {
    %c0_i32 = arith.constant 0 : i32
    %c0_i32_0 = arith.constant 0 : i32
    %c0_i32_1 = arith.constant 0 : i32
    return %c0_i32, %c0_i32_0 : i32, i32
  }
  func.func @transform_16(%arg0: i32, %arg1: i32) -> (i32, i32) {
    %c0_i32 = arith.constant 0 : i32
    %c0_i32_0 = arith.constant 0 : i32
    %c0_i32_1 = arith.constant 0 : i32
    return %c0_i32, %c0_i32_0 : i32, i32
  }
  func.func @transform_17(%arg0: i32, %arg1: i32) -> (i32, i32) {
    %c0_i32 = arith.constant 0 : i32
    %c0_i32_0 = arith.constant 0 : i32
    %c0_i32_1 = arith.constant 0 : i32
    return %c0_i32, %c0_i32_0 : i32, i32
  }
  func.func @transform_18(%arg0: i32, %arg1: i32) -> (i32, i32, i32) {
    %c0_i32 = arith.constant 0 : i32
    %c0_i32_0 = arith.constant 0 : i32
    return %arg0, %arg1, %c0_i32 : i32, i32, i32
  }
}

</mosaic_0001>

<llo_original>
// kernel: tpu_custom_call.1
$region0: #{tpu_custom_call.1}
  #allocation0 [shape = 'u32[]', space=smem, size = 0x4, offset = 0x4, fixed_abs, tag = 'smem constant byte address 0x4 - core index']
  #allocation1 [shape = 'u32[144,128]{1,0:T(1,128)}', space=vmem, size = 0x12000, scoped, tag = 'internal scratch']
  #allocation2 [shape = 'bf16[16,32]{1,0:T(8,128)(2,1)}', space=vmem, size = 0x1000, scoped, tag = 'scratch operand']
  #allocation3 [shape = 'bf16[16,32]{1,0:T(8,128)(2,1)}', space=vmem, size = 0x1000, scoped, tag = 'scratch operand']
  #allocation4 [shape = 'bf16[8,32]{1,0:T(8,128)(2,1)}', space=vmem, size = 0x800, scoped, tag = 'scratch operand']
  %s0 = inlined_call_operand.vmem [shape: f32[2,16,32], index: 0, kind: input, shape index: {}]
  %s1 = inlined_call_operand.vmem [shape: bf16[2,16,32], index: 1, kind: input, shape index: {}]
  %s2 = inlined_call_operand.vmem [shape: f32[1,32], index: 2, kind: input, shape index: {}]
  %s3 = inlined_call_operand.vmem [shape: f32[1,32], index: 3, kind: input, shape index: {}]
  %s4 = inlined_call_operand.hbm [shape: bf16[32,32], index: 4, kind: input, shape index: {}]
  %s5 = inlined_call_operand.vmem [shape: f32[1,32], index: 5, kind: input, shape index: {}]
  %s6 = inlined_call_operand.hbm [shape: bf16[32,32], index: 6, kind: input, shape index: {}]
  %s7 = inlined_call_operand.vmem [shape: f32[1,32], index: 7, kind: input, shape index: {}]
  %s8 = inlined_call_operand.hbm [shape: bf16[32,32], index: 8, kind: input, shape index: {}]
  %s9 = inlined_call_operand.vmem [shape: f32[1,32], index: 9, kind: input, shape index: {}]
  %s10 = inlined_call_operand.hbm [shape: bf16[32,32], index: 10, kind: input, shape index: {}]
  %s11 = inlined_call_operand.vmem [shape: f32[1,32], index: 11, kind: input, shape index: {}]
  %s12 = inlined_call_operand.vmem [shape: f32[1,32], index: 12, kind: input, shape index: {}]
  %s13 = inlined_call_operand.vmem [shape: f32[1,32], index: 13, kind: input, shape index: {}]
  %s14 = inlined_call_operand.hbm [shape: bf16[32,64], index: 14, kind: input, shape index: {}]
  %s15 = inlined_call_operand.vmem [shape: f32[1,64], index: 15, kind: input, shape index: {}]
  %s16 = inlined_call_operand.vmem [shape: bf16[64,32], index: 16, kind: input, shape index: {}]
  %s17 = inlined_call_operand.vmem [shape: f32[1,32], index: 17, kind: input, shape index: {}]
  %s18 = inlined_call_operand.hbm [shape: f32[2,16,32], index: 18, kind: output, shape index: {}]
  %s19 = sld [smem:[#allocation0]]
  $region129: #{tpu_custom_call.1} parent=0
    _
  %s21 = ssub.s32 1, %s19
  %s22 = scalar_select 0, %s21, %s19
  $region1: #{tpu_custom_call.1} parent=0
    #allocation5 [shape = 'u8[8192]{0}', space=vmem, size = 0x2000, scoped, tag = 'input window, operand 4, single buffered']
    #allocation6 [shape = 's32[2]{0}', space=sflag, size = 0x8, scoped, tag = 'scoped memory for tpu_custom_call.1']
    #allocation7 [shape = 's32[2]{0}', space=sflag, size = 0x8, scoped, tag = 'scoped memory for tpu_custom_call.1']
    #allocation8 [shape = 'u8[8192]{0}', space=vmem, size = 0x2000, scoped, tag = 'input window, operand 6, single buffered']
    #allocation9 [shape = 's32[1]{0}', space=sflag, size = 0x4, scoped, tag = 'scoped memory for tpu_custom_call.1']
    #allocation10 [shape = 'u8[8192]{0}', space=vmem, size = 0x2000, scoped, tag = 'input window, operand 8, single buffered']
    #allocation11 [shape = 'u8[8192]{0}', space=vmem, size = 0x2000, scoped, tag = 'input window, operand 10, single buffered']
    #allocation12 [shape = 's32[1]{0}', space=sflag, size = 0x4, scoped, tag = 'scoped memory for tpu_custom_call.1']
    #allocation13 [shape = 'u8[8192]{0}', space=vmem, size = 0x2000, scoped, tag = 'input window, operand 14, single buffered']
    #allocation14 [shape = 'u8[8192]{0}', space=vmem, size = 0x2000, scoped, tag = 'output window, operand 0']
    %23 = vsyncpa [#allocation6], 0
    %24 = vsyncpa [#allocation9], 0
    %25 = vsyncpa [#allocation12], 0
    %26 = vsyncpa [#allocation7], 0
    %s27 = scalar_lea.sflag [#allocation7], 1
    %28 = vsyncpa %s27, 0
    loop: start=0, step=1, limit=6
    $region2: #{tpu_custom_call.1} parent=1 // loop_pre_header
      _
    $region3: #{tpu_custom_call.1} parent=1 // loop_header
      %s30 = sphi 0, %s34
      %p31 = scmp.ge.s32.totalorder %s30, 6
      %s37 = sphi 0, %s49
      %s38 = sphi 0, %s45
      %s39 = sphi 0, %s37
      %s40 = sphi 0, %s38
      %s41 = sphi 0, %s39
      %s42 = sphi 0, %s40
      %s54 = sphi 0, %s56
      %s57 = sphi 0, %s54
      %s58 = sphi 0, %s57
      %s74 = sphi 0, %s58
      %s80 = sphi 0, %s82
      %s83 = sphi 0, %s80
      %s84 = sphi 0, %s83
      %s100 = sphi 0, %s84
      %s104 = sphi 0, %s104
      %s106 = sphi 0, %s104
      %s107 = sphi 0, %s106
      %s121 = sphi 0, %s107
      %s125 = sphi 0, %s125
      %s127 = sphi 0, %s125
      %s128 = sphi 0, %s127
      %s142 = sphi 0, %s128
      %s146 = sphi 0, %s146
      %s148 = sphi 0, %s146
      %s149 = sphi 0, %s148
      %s163 = sphi 0, %s149
      %s167 = sphi 0, %s167
      %s169 = sphi 0, %s167
      %s170 = sphi 0, %s169
      %s184 = sphi 0, %s170
      %s188 = sphi 0, %s188
      %s190 = sphi 0, %s188
      %s191 = sphi 0, %s190
      %s205 = sphi 0, %s191
      %s209 = sphi 0, %s209
      %s211 = sphi 0, %s209
      %s212 = sphi 0, %s211
      %s226 = sphi 0, %s212
      %s230 = sphi 0, %s230
      %s232 = sphi 0, %s230
      %s233 = sphi 0, %s232
      %s247 = sphi 0, %s233
      %s251 = sphi 0, %s251
      %s253 = sphi 0, %s251
      %s254 = sphi 0, %s253
      %s268 = sphi 0, %s254
      %s272 = sphi 0, %s272
      %s274 = sphi 0, %s272
      %s275 = sphi 0, %s274
      %s289 = sphi 0, %s275
      %s293 = sphi 0, %s293
      %s295 = sphi 0, %s293
      %s296 = sphi 0, %s295
      %s310 = sphi 0, %s296
      %s314 = sphi 0, %s314
      %s316 = sphi 0, %s314
      %s317 = sphi 0, %s316
      %s331 = sphi 0, %s317
      %s335 = sphi 0, %s335
      %s337 = sphi 0, %s335
      %s338 = sphi 0, %s337
      %s352 = sphi 0, %s338
      %s356 = sphi 0, %s356
      %s358 = sphi 0, %s356
      %s359 = sphi 0, %s358
      %s373 = sphi 0, %s359
      %s377 = sphi 0, %s377
      %s379 = sphi 0, %s377
      %s380 = sphi 0, %s379
      %s394 = sphi 0, %s380
      %s398 = sphi 0, %s398
      %s400 = sphi 0, %s398
      %s401 = sphi 0, %s400
      %s415 = sphi 0, %s401
      %s419 = sphi 0, %s419
      %s421 = sphi 0, %s419
      %s422 = sphi 0, %s421
      %s436 = sphi 0, %s422
      %s444 = sphi 0, %s446
      %s447 = sphi 0, %s444
      %s448 = sphi 0, %s447
      %s464 = sphi 0, %s448
    $region4: #{tpu_custom_call.1} parent=1 // loop_header_branch
      %33 = sbr.rel (%p31) target = $region8
    $region5: #{tpu_custom_call.1} parent=1 // loop_body
      %s35 = ssub.s32 %s30, 1
      %s36 = ssub.s32 %s30, 2
      %s43 = sadd.s32 1, %s38
      %p44 = scmp.ge.s32.totalorder %s43, 2
      %s45 = scalar_select %p44, 0, %s43
      %s46 = sadd.s32 1, %s37
      %s47 = scalar_select %p44, %s46, %s37
      %p48 = scmp.ge.s32.totalorder %s47, 2
      %s49 = scalar_select %p48, 0, %s47
      %s50 = ssub.s32 %s37, %s49
      %s51 = ssub.s32 %s38, %s45
      %s52 = sor.u32 %s50, %s51
      %p53 = scmp.eq.s32.totalorder %s52, 0
      %s55 = sadd.s32 %s54, 1
      %s56 = scalar_select %p53, %s54, %s55
      %p59 = pneg %p53
      %p60 = scmp.eq.s32.totalorder %s30, 3
      %p61 = por %p59, %p60
      %p62 = scmp.ne.s32.totalorder %s54, %s57
      %p63 = scmp.eq.s32.totalorder %s30, 0
      %p64 = por %p62, %p63
      %p65 = scmp.ne.s32.totalorder %s54, %s57
      %p66 = scmp.eq.s32.totalorder %s35, 3
      %p67 = por %p65, %p66
      %p68 = scmp.ne.s32.totalorder %s57, %s58
      %p69 = scmp.eq.s32.totalorder %s35, 0
      %p70 = por %p68, %p69
      %p71 = scmp.ne.s32.totalorder %s57, %s58
      %p72 = scmp.eq.s32.totalorder %s36, 3
      %p73 = por %p71, %p72
      %p75 = scmp.ne.s32.totalorder %s58, %s74
      %p76 = scmp.eq.s32.totalorder %s36, 0
      %p77 = por %p75, %p76
      %s78 = ssub.s32 %s37, %s49
      %p79 = scmp.eq.s32.totalorder %s78, 0
      %s81 = sadd.s32 %s80, 1
      %s82 = scalar_select %p79, %s80, %s81
      %p85 = pneg %p79
      %p86 = scmp.eq.s32.totalorder %s30, 3
      %p87 = por %p85, %p86
      %p88 = scmp.ne.s32.totalorder %s80, %s83
      %p89 = scmp.eq.s32.totalorder %s30, 0
      %p90 = por %p88, %p89
      %p91 = scmp.ne.s32.totalorder %s80, %s83
      %p92 = scmp.eq.s32.totalorder %s35, 3
      %p93 = por %p91, %p92
      %p94 = scmp.ne.s32.totalorder %s83, %s84
      %p95 = scmp.eq.s32.totalorder %s35, 0
      %p96 = por %p94, %p95
      %p97 = scmp.ne.s32.totalorder %s83, %s84
      %p98 = scmp.eq.s32.totalorder %s36, 3
      %p99 = por %p97, %p98
      %p101 = scmp.ne.s32.totalorder %s84, %s100
      %p102 = scmp.eq.s32.totalorder %s36, 0
      %p103 = por %p101, %p102
      %s105 = sadd.s32 %s104, 1
      %p108 = scmp.eq.s32.totalorder %s30, 3
      %p109 = scmp.ne.s32.totalorder %s104, %s106
      %p110 = scmp.eq.s32.totalorder %s30, 0
      %p111 = por %p109, %p110
      %p112 = scmp.ne.s32.totalorder %s104, %s106
      %p113 = scmp.eq.s32.totalorder %s35, 3
      %p114 = por %p112, %p113
      %p115 = scmp.ne.s32.totalorder %s106, %s107
      %p116 = scmp.eq.s32.totalorder %s35, 0
      %p117 = por %p115, %p116
      %p118 = scmp.ne.s32.totalorder %s106, %s107
      %p119 = scmp.eq.s32.totalorder %s36, 3
      %p120 = por %p118, %p119
      %p122 = scmp.ne.s32.totalorder %s107, %s121
      %p123 = scmp.eq.s32.totalorder %s36, 0
      %p124 = por %p122, %p123
      %s126 = sadd.s32 %s125, 1
      %p129 = scmp.eq.s32.totalorder %s30, 3
      %p130 = scmp.ne.s32.totalorder %s125, %s127
      %p131 = scmp.eq.s32.totalorder %s30, 0
      %p132 = por %p130, %p131
      %p133 = scmp.ne.s32.totalorder %s125, %s127
      %p134 = scmp.eq.s32.totalorder %s35, 3
      %p135 = por %p133, %p134
      %p136 = scmp.ne.s32.totalorder %s127, %s128
      %p137 = scmp.eq.s32.totalorder %s35, 0
      %p138 = por %p136, %p137
      %p139 = scmp.ne.s32.totalorder %s127, %s128
      %p140 = scmp.eq.s32.totalorder %s36, 3
      %p141 = por %p139, %p140
      %p143 = scmp.ne.s32.totalorder %s128, %s142
      %p144 = scmp.eq.s32.totalorder %s36, 0
      %p145 = por %p143, %p144
      %s147 = sadd.s32 %s146, 1
      %p150 = scmp.eq.s32.totalorder %s30, 3
      %p151 = scmp.ne.s32.totalorder %s146, %s148
      %p152 = scmp.eq.s32.totalorder %s30, 0
      %p153 = por %p151, %p152
      %p154 = scmp.ne.s32.totalorder %s146, %s148
      %p155 = scmp.eq.s32.totalorder %s35, 3
      %p156 = por %p154, %p155
      %p157 = scmp.ne.s32.totalorder %s148, %s149
      %p158 = scmp.eq.s32.totalorder %s35, 0
      %p159 = por %p157, %p158
      %p160 = scmp.ne.s32.totalorder %s148, %s149
      %p161 = scmp.eq.s32.totalorder %s36, 3
      %p162 = por %p160, %p161
      %p164 = scmp.ne.s32.totalorder %s149, %s163
      %p165 = scmp.eq.s32.totalorder %s36, 0
      %p166 = por %p164, %p165
      %s168 = sadd.s32 %s167, 1
      %p171 = scmp.eq.s32.totalorder %s30, 3
      %p172 = scmp.ne.s32.totalorder %s167, %s169
      %p173 = scmp.eq.s32.totalorder %s30, 0
      %p174 = por %p172, %p173
      %p175 = scmp.ne.s32.totalorder %s167, %s169
      %p176 = scmp.eq.s32.totalorder %s35, 3
      %p177 = por %p175, %p176
      %p178 = scmp.ne.s32.totalorder %s169, %s170
      %p179 = scmp.eq.s32.totalorder %s35, 0
      %p180 = por %p178, %p179
      %p181 = scmp.ne.s32.totalorder %s169, %s170
      %p182 = scmp.eq.s32.totalorder %s36, 3
      %p183 = por %p181, %p182
      %p185 = scmp.ne.s32.totalorder %s170, %s184
      %p186 = scmp.eq.s32.totalorder %s36, 0
      %p187 = por %p185, %p186
      %s189 = sadd.s32 %s188, 1
      %p192 = scmp.eq.s32.totalorder %s30, 3
      %p193 = scmp.ne.s32.totalorder %s188, %s190
      %p194 = scmp.eq.s32.totalorder %s30, 0
      %p195 = por %p193, %p194
      %p196 = scmp.ne.s32.totalorder %s188, %s190
      %p197 = scmp.eq.s32.totalorder %s35, 3
      %p198 = por %p196, %p197
      %p199 = scmp.ne.s32.totalorder %s190, %s191
      %p200 = scmp.eq.s32.totalorder %s35, 0
      %p201 = por %p199, %p200
      %p202 = scmp.ne.s32.totalorder %s190, %s191
      %p203 = scmp.eq.s32.totalorder %s36, 3
      %p204 = por %p202, %p203
      %p206 = scmp.ne.s32.totalorder %s191, %s205
      %p207 = scmp.eq.s32.totalorder %s36, 0
      %p208 = por %p206, %p207
      %s210 = sadd.s32 %s209, 1
      %p213 = scmp.eq.s32.totalorder %s30, 3
      %p214 = scmp.ne.s32.totalorder %s209, %s211
      %p215 = scmp.eq.s32.totalorder %s30, 0
      %p216 = por %p214, %p215
      %p217 = scmp.ne.s32.totalorder %s209, %s211
      %p218 = scmp.eq.s32.totalorder %s35, 3
      %p219 = por %p217, %p218
      %p220 = scmp.ne.s32.totalorder %s211, %s212
      %p221 = scmp.eq.s32.totalorder %s35, 0
      %p222 = por %p220, %p221
      %p223 = scmp.ne.s32.totalorder %s211, %s212
      %p224 = scmp.eq.s32.totalorder %s36, 3
      %p225 = por %p223, %p224
      %p227 = scmp.ne.s32.totalorder %s212, %s226
      %p228 = scmp.eq.s32.totalorder %s36, 0
      %p229 = por %p227, %p228
      %s231 = sadd.s32 %s230, 1
      %p234 = scmp.eq.s32.totalorder %s30, 3
      %p235 = scmp.ne.s32.totalorder %s230, %s232
      %p236 = scmp.eq.s32.totalorder %s30, 0
      %p237 = por %p235, %p236
      %p238 = scmp.ne.s32.totalorder %s230, %s232
      %p239 = scmp.eq.s32.totalorder %s35, 3
      %p240 = por %p238, %p239
      %p241 = scmp.ne.s32.totalorder %s232, %s233
      %p242 = scmp.eq.s32.totalorder %s35, 0
      %p243 = por %p241, %p242
      %p244 = scmp.ne.s32.totalorder %s232, %s233
      %p245 = scmp.eq.s32.totalorder %s36, 3
      %p246 = por %p244, %p245
      %p248 = scmp.ne.s32.totalorder %s233, %s247
      %p249 = scmp.eq.s32.totalorder %s36, 0
      %p250 = por %p248, %p249
      %s252 = sadd.s32 %s251, 1
      %p255 = scmp.eq.s32.totalorder %s30, 3
      %p256 = scmp.ne.s32.totalorder %s251, %s253
      %p257 = scmp.eq.s32.totalorder %s30, 0
      %p258 = por %p256, %p257
      %p259 = scmp.ne.s32.totalorder %s251, %s253
      %p260 = scmp.eq.s32.totalorder %s35, 3
      %p261 = por %p259, %p260
      %p262 = scmp.ne.s32.totalorder %s253, %s254
      %p263 = scmp.eq.s32.totalorder %s35, 0
      %p264 = por %p262, %p263
      %p265 = scmp.ne.s32.totalorder %s253, %s254
      %p266 = scmp.eq.s32.totalorder %s36, 3
      %p267 = por %p265, %p266
      %p269 = scmp.ne.s32.totalorder %s254, %s268
      %p270 = scmp.eq.s32.totalorder %s36, 0
      %p271 = por %p269, %p270
      %s273 = sadd.s32 %s272, 1
      %p276 = scmp.eq.s32.totalorder %s30, 3
      %p277 = scmp.ne.s32.totalorder %s272, %s274
      %p278 = scmp.eq.s32.totalorder %s30, 0
      %p279 = por %p277, %p278
      %p280 = scmp.ne.s32.totalorder %s272, %s274
      %p281 = scmp.eq.s32.totalorder %s35, 3
      %p282 = por %p280, %p281
      %p283 = scmp.ne.s32.totalorder %s274, %s275
      %p284 = scmp.eq.s32.totalorder %s35, 0
      %p285 = por %p283, %p284
      %p286 = scmp.ne.s32.totalorder %s274, %s275
      %p287 = scmp.eq.s32.totalorder %s36, 3
      %p288 = por %p286, %p287
      %p290 = scmp.ne.s32.totalorder %s275, %s289
      %p291 = scmp.eq.s32.totalorder %s36, 0
      %p292 = por %p290, %p291
      %s294 = sadd.s32 %s293, 1
      %p297 = scmp.eq.s32.totalorder %s30, 3
      %p298 = scmp.ne.s32.totalorder %s293, %s295
      %p299 = scmp.eq.s32.totalorder %s30, 0
      %p300 = por %p298, %p299
      %p301 = scmp.ne.s32.totalorder %s293, %s295
      %p302 = scmp.eq.s32.totalorder %s35, 3
      %p303 = por %p301, %p302
      %p304 = scmp.ne.s32.totalorder %s295, %s296
      %p305 = scmp.eq.s32.totalorder %s35, 0
      %p306 = por %p304, %p305
      %p307 = scmp.ne.s32.totalorder %s295, %s296
      %p308 = scmp.eq.s32.totalorder %s36, 3
      %p309 = por %p307, %p308
      %p311 = scmp.ne.s32.totalorder %s296, %s310
      %p312 = scmp.eq.s32.totalorder %s36, 0
      %p313 = por %p311, %p312
      %s315 = sadd.s32 %s314, 1
      %p318 = scmp.eq.s32.totalorder %s30, 3
      %p319 = scmp.ne.s32.totalorder %s314, %s316
      %p320 = scmp.eq.s32.totalorder %s30, 0
      %p321 = por %p319, %p320
      %p322 = scmp.ne.s32.totalorder %s314, %s316
      %p323 = scmp.eq.s32.totalorder %s35, 3
      %p324 = por %p322, %p323
      %p325 = scmp.ne.s32.totalorder %s316, %s317
      %p326 = scmp.eq.s32.totalorder %s35, 0
      %p327 = por %p325, %p326
      %p328 = scmp.ne.s32.totalorder %s316, %s317
      %p329 = scmp.eq.s32.totalorder %s36, 3
      %p330 = por %p328, %p329
      %p332 = scmp.ne.s32.totalorder %s317, %s331
      %p333 = scmp.eq.s32.totalorder %s36, 0
      %p334 = por %p332, %p333
      %s336 = sadd.s32 %s335, 1
      %p339 = scmp.eq.s32.totalorder %s30, 3
      %p340 = scmp.ne.s32.totalorder %s335, %s337
      %p341 = scmp.eq.s32.totalorder %s30, 0
      %p342 = por %p340, %p341
      %p343 = scmp.ne.s32.totalorder %s335, %s337
      %p344 = scmp.eq.s32.totalorder %s35, 3
      %p345 = por %p343, %p344
      %p346 = scmp.ne.s32.totalorder %s337, %s338
      %p347 = scmp.eq.s32.totalorder %s35, 0
      %p348 = por %p346, %p347
      %p349 = scmp.ne.s32.totalorder %s337, %s338
      %p350 = scmp.eq.s32.totalorder %s36, 3
      %p351 = por %p349, %p350
      %p353 = scmp.ne.s32.totalorder %s338, %s352
      %p354 = scmp.eq.s32.totalorder %s36, 0
      %p355 = por %p353, %p354
      %s357 = sadd.s32 %s356, 1
      %p360 = scmp.eq.s32.totalorder %s30, 3
      %p361 = scmp.ne.s32.totalorder %s356, %s358
      %p362 = scmp.eq.s32.totalorder %s30, 0
      %p363 = por %p361, %p362
      %p364 = scmp.ne.s32.totalorder %s356, %s358
      %p365 = scmp.eq.s32.totalorder %s35, 3
      %p366 = por %p364, %p365
      %p367 = scmp.ne.s32.totalorder %s358, %s359
      %p368 = scmp.eq.s32.totalorder %s35, 0
      %p369 = por %p367, %p368
      %p370 = scmp.ne.s32.totalorder %s358, %s359
      %p371 = scmp.eq.s32.totalorder %s36, 3
      %p372 = por %p370, %p371
      %p374 = scmp.ne.s32.totalorder %s359, %s373
      %p375 = scmp.eq.s32.totalorder %s36, 0
      %p376 = por %p374, %p375
      %s378 = sadd.s32 %s377, 1
      %p381 = scmp.eq.s32.totalorder %s30, 3
      %p382 = scmp.ne.s32.totalorder %s377, %s379
      %p383 = scmp.eq.s32.totalorder %s30, 0
      %p384 = por %p382, %p383
      %p385 = scmp.ne.s32.totalorder %s377, %s379
      %p386 = scmp.eq.s32.totalorder %s35, 3
      %p387 = por %p385, %p386
      %p388 = scmp.ne.s32.totalorder %s379, %s380
      %p389 = scmp.eq.s32.totalorder %s35, 0
      %p390 = por %p388, %p389
      %p391 = scmp.ne.s32.totalorder %s379, %s380
      %p392 = scmp.eq.s32.totalorder %s36, 3
      %p393 = por %p391, %p392
      %p395 = scmp.ne.s32.totalorder %s380, %s394
      %p396 = scmp.eq.s32.totalorder %s36, 0
      %p397 = por %p395, %p396
      %s399 = sadd.s32 %s398, 1
      %p402 = scmp.eq.s32.totalorder %s30, 3
      %p403 = scmp.ne.s32.totalorder %s398, %s400
      %p404 = scmp.eq.s32.totalorder %s30, 0
      %p405 = por %p403, %p404
      %p406 = scmp.ne.s32.totalorder %s398, %s400
      %p407 = scmp.eq.s32.totalorder %s35, 3
      %p408 = por %p406, %p407
      %p409 = scmp.ne.s32.totalorder %s400, %s401
      %p410 = scmp.eq.s32.totalorder %s35, 0
      %p411 = por %p409, %p410
      %p412 = scmp.ne.s32.totalorder %s400, %s401
      %p413 = scmp.eq.s32.totalorder %s36, 3
      %p414 = por %p412, %p413
      %p416 = scmp.ne.s32.totalorder %s401, %s415
      %p417 = scmp.eq.s32.totalorder %s36, 0
      %p418 = por %p416, %p417
      %s420 = sadd.s32 %s419, 1
      %p423 = scmp.eq.s32.totalorder %s30, 3
      %p424 = scmp.ne.s32.totalorder %s419, %s421
      %p425 = scmp.eq.s32.totalorder %s30, 0
      %p426 = por %p424, %p425
      %p427 = scmp.ne.s32.totalorder %s419, %s421
      %p428 = scmp.eq.s32.totalorder %s35, 3
      %p429 = por %p427, %p428
      %p430 = scmp.ne.s32.totalorder %s421, %s422
      %p431 = scmp.eq.s32.totalorder %s35, 0
      %p432 = por %p430, %p431
      %p433 = scmp.ne.s32.totalorder %s421, %s422
      %p434 = scmp.eq.s32.totalorder %s36, 3
      %p435 = por %p433, %p434
      %p437 = scmp.ne.s32.totalorder %s422, %s436
      %p438 = scmp.eq.s32.totalorder %s36, 0
      %p439 = por %p437, %p438
      %s440 = ssub.s32 %s37, %s49
      %s441 = ssub.s32 %s38, %s45
      %s442 = sor.u32 %s440, %s441
      %p443 = scmp.eq.s32.totalorder %s442, 0
      %s445 = sadd.s32 %s444, 1
      %s446 = scalar_select %p443, %s444, %s445
      %p449 = pneg %p443
      %p450 = scmp.eq.s32.totalorder %s30, 3
      %p451 = por %p449, %p450
      %p452 = scmp.ne.s32.totalorder %s444, %s447
      %p453 = scmp.eq.s32.totalorder %s30, 0
      %p454 = por %p452, %p453
      %p455 = scmp.ne.s32.totalorder %s444, %s447
      %p456 = scmp.eq.s32.totalorder %s35, 3
      %p457 = por %p455, %p456
      %p458 = scmp.ne.s32.totalorder %s447, %s448
      %p459 = scmp.eq.s32.totalorder %s35, 0
      %p460 = por %p458, %p459
      %p461 = scmp.ne.s32.totalorder %s447, %s448
      %p462 = scmp.eq.s32.totalorder %s36, 3
      %p463 = por %p461, %p462
      %p465 = scmp.ne.s32.totalorder %s448, %s464
      %p466 = scmp.eq.s32.totalorder %s36, 0
      %p467 = por %p465, %p466
      %p468 = scmp.le.s32.totalorder 1, %s30
      %p469 = scmp.lt.s32.totalorder %s30, 5
      %p470 = pnand %p468, %p469
      %p471 = pneg %p470
      // Predicated region
      $region9: #{tpu_custom_call.1} parent=5 // pred_check
        _
      $region10: #{tpu_custom_call.1} parent=5 // pred_check_branch
        %473 = sbr.rel (%p470) target = $region12
      $region11: #{tpu_custom_call.1} parent=5 // pred_region
        %s474 = ssub.s32 %s30, 1
        // Predicated region
        $region13: #{tpu_custom_call.1} parent=11 // pred_check
          %p475 = pneg %p117
        $region14: #{tpu_custom_call.1} parent=11 // pred_check_branch
          %477 = sbr.rel (%p475) target = $region16
        $region15: #{tpu_custom_call.1} parent=11 // pred_region
          _
        $region16: #{tpu_custom_call.1} parent=11 // pred_fallthru
          _
        // Predicated region
        $region17: #{tpu_custom_call.1} parent=11 // pred_check
          %p478 = pneg %p138
        $region18: #{tpu_custom_call.1} parent=11 // pred_check_branch
          %480 = sbr.rel (%p478) target = $region20
        $region19: #{tpu_custom_call.1} parent=11 // pred_region
          _
        $region20: #{tpu_custom_call.1} parent=11 // pred_fallthru
          _
        // Predicated region
        $region21: #{tpu_custom_call.1} parent=11 // pred_check
          %p481 = pneg %p159
        $region22: #{tpu_custom_call.1} parent=11 // pred_check_branch
          %483 = sbr.rel (%p481) target = $region24
        $region23: #{tpu_custom_call.1} parent=11 // pred_region
          %s485 = ssub.s32 256, 256
          %486 = vsyncadd [#allocation6], %s485
          %s487 = sshll.u32 [#allocation5], 4
          %s488 = int_to_ptr.vmem [resolvable:$true] %s487
          %493 = dma.hbm_to_vmem [thread:$0]  %s4, 256, %s488, [#allocation6], 64, 64, 4
        $region24: #{tpu_custom_call.1} parent=11 // pred_fallthru
          _
        // Predicated region
        $region25: #{tpu_custom_call.1} parent=11 // pred_check
          %p494 = pneg %p180
        $region26: #{tpu_custom_call.1} parent=11 // pred_check_branch
          %496 = sbr.rel (%p494) target = $region28
        $region27: #{tpu_custom_call.1} parent=11 // pred_region
          _
        $region28: #{tpu_custom_call.1} parent=11 // pred_fallthru
          _
        // Predicated region
        $region29: #{tpu_custom_call.1} parent=11 // pred_check
          %p497 = pneg %p201
        $region30: #{tpu_custom_call.1} parent=11 // pred_check_branch
          %499 = sbr.rel (%p497) target = $region32
        $region31: #{tpu_custom_call.1} parent=11 // pred_region
          %s501 = ssub.s32 256, 256
          %502 = vsyncadd [#allocation9], %s501
          %s503 = sshll.u32 [#allocation8], 4
          %s504 = int_to_ptr.vmem [resolvable:$true] %s503
          %509 = dma.hbm_to_vmem [thread:$0]  %s6, 256, %s504, [#allocation9], 64, 64, 4
        $region32: #{tpu_custom_call.1} parent=11 // pred_fallthru
          _
        // Predicated region
        $region33: #{tpu_custom_call.1} parent=11 // pred_check
          %p510 = pneg %p222
        $region34: #{tpu_custom_call.1} parent=11 // pred_check_branch
          %512 = sbr.rel (%p510) target = $region36
        $region35: #{tpu_custom_call.1} parent=11 // pred_region
          _
        $region36: #{tpu_custom_call.1} parent=11 // pred_fallthru
          _
        // Predicated region
        $region37: #{tpu_custom_call.1} parent=11 // pred_check
          %p513 = pneg %p243
        $region38: #{tpu_custom_call.1} parent=11 // pred_check_branch
          %515 = sbr.rel (%p513) target = $region40
        $region39: #{tpu_custom_call.1} parent=11 // pred_region
          %s517 = ssub.s32 256, 256
          %518 = vsyncadd [#allocation9], %s517
          %s519 = sshll.u32 [#allocation10], 4
          %s520 = int_to_ptr.vmem [resolvable:$true] %s519
          %525 = dma.hbm_to_vmem [thread:$0]  %s8, 256, %s520, [#allocation9], 64, 64, 4
        $region40: #{tpu_custom_call.1} parent=11 // pred_fallthru
          _
        // Predicated region
        $region41: #{tpu_custom_call.1} parent=11 // pred_check
          %p526 = pneg %p264
        $region42: #{tpu_custom_call.1} parent=11 // pred_check_branch
          %528 = sbr.rel (%p526) target = $region44
        $region43: #{tpu_custom_call.1} parent=11 // pred_region
          _
        $region44: #{tpu_custom_call.1} parent=11 // pred_fallthru
          _
        // Predicated region
        $region45: #{tpu_custom_call.1} parent=11 // pred_check
          %p529 = pneg %p285
        $region46: #{tpu_custom_call.1} parent=11 // pred_check_branch
          %531 = sbr.rel (%p529) target = $region48
        $region47: #{tpu_custom_call.1} parent=11 // pred_region
          %s533 = ssub.s32 256, 256
          %534 = vsyncadd [#allocation12], %s533
          %s535 = sshll.u32 [#allocation11], 4
          %s536 = int_to_ptr.vmem [resolvable:$true] %s535
          %541 = dma.hbm_to_vmem [thread:$0]  %s10, 256, %s536, [#allocation12], 64, 64, 4
        $region48: #{tpu_custom_call.1} parent=11 // pred_fallthru
          _
        // Predicated region
        $region49: #{tpu_custom_call.1} parent=11 // pred_check
          %p542 = pneg %p306
        $region50: #{tpu_custom_call.1} parent=11 // pred_check_branch
          %544 = sbr.rel (%p542) target = $region52
        $region51: #{tpu_custom_call.1} parent=11 // pred_region
          _
        $region52: #{tpu_custom_call.1} parent=11 // pred_fallthru
          _
        // Predicated region
        $region53: #{tpu_custom_call.1} parent=11 // pred_check
          %p545 = pneg %p327
        $region54: #{tpu_custom_call.1} parent=11 // pred_check_branch
          %547 = sbr.rel (%p545) target = $region56
        $region55: #{tpu_custom_call.1} parent=11 // pred_region
          _
        $region56: #{tpu_custom_call.1} parent=11 // pred_fallthru
          _
        // Predicated region
        $region57: #{tpu_custom_call.1} parent=11 // pred_check
          %p548 = pneg %p348
        $region58: #{tpu_custom_call.1} parent=11 // pred_check_branch
          %550 = sbr.rel (%p548) target = $region60
        $region59: #{tpu_custom_call.1} parent=11 // pred_region
          _
        $region60: #{tpu_custom_call.1} parent=11 // pred_fallthru
          _
        // Predicated region
        $region61: #{tpu_custom_call.1} parent=11 // pred_check
          %p551 = pneg %p369
        $region62: #{tpu_custom_call.1} parent=11 // pred_check_branch
          %553 = sbr.rel (%p551) target = $region64
        $region63: #{tpu_custom_call.1} parent=11 // pred_region
          %s555 = ssub.s32 256, 256
          %556 = vsyncadd [#allocation12], %s555
          %s557 = sshll.u32 [#allocation13], 4
          %s558 = int_to_ptr.vmem [resolvable:$true] %s557
          %563 = dma.hbm_to_vmem [thread:$0]  %s14, 256, %s558, [#allocation12], 64, 64, 4
        $region64: #{tpu_custom_call.1} parent=11 // pred_fallthru
          _
        // Predicated region
        $region65: #{tpu_custom_call.1} parent=11 // pred_check
          %p564 = pneg %p390
        $region66: #{tpu_custom_call.1} parent=11 // pred_check_branch
          %566 = sbr.rel (%p564) target = $region68
        $region67: #{tpu_custom_call.1} parent=11 // pred_region
          _
        $region68: #{tpu_custom_call.1} parent=11 // pred_fallthru
          _
        // Predicated region
        $region69: #{tpu_custom_call.1} parent=11 // pred_check
          %p567 = pneg %p411
        $region70: #{tpu_custom_call.1} parent=11 // pred_check_branch
          %569 = sbr.rel (%p567) target = $region72
        $region71: #{tpu_custom_call.1} parent=11 // pred_region
          _
        $region72: #{tpu_custom_call.1} parent=11 // pred_fallthru
          _
        // Predicated region
        $region73: #{tpu_custom_call.1} parent=11 // pred_check
          %p570 = pneg %p432
        $region74: #{tpu_custom_call.1} parent=11 // pred_check_branch
          %572 = sbr.rel (%p570) target = $region76
        $region75: #{tpu_custom_call.1} parent=11 // pred_region
          _
        $region76: #{tpu_custom_call.1} parent=11 // pred_fallthru
          _
      $region12: #{tpu_custom_call.1} parent=5 // pred_fallthru
        _
      %p573 = scmp.lt.s32.totalorder %s30, 4
      // Predicated region
      $region77: #{tpu_custom_call.1} parent=5 // pred_check
        %p574 = pneg %p573
      $region78: #{tpu_custom_call.1} parent=5 // pred_check_branch
        %576 = sbr.rel (%p574) target = $region80
      $region79: #{tpu_custom_call.1} parent=5 // pred_region
        // Predicated region
        $region81: #{tpu_custom_call.1} parent=79 // pred_check
          %p577 = pneg %p64
        $region82: #{tpu_custom_call.1} parent=79 // pred_check_branch
          %579 = sbr.rel (%p577) target = $region84
        $region83: #{tpu_custom_call.1} parent=79 // pred_region
          %p580 = scmp.lt.s32.totalorder %s37, 1
          %s581 = scalar_select %p580, %s37, 1
          %p582 = scmp.lt.s32.totalorder %s38, 1
          %s583 = scalar_select %p582, %s38, 1
          %s584 = smul.addr %s581, 2
          %s585 = sadd.s32 %s583, %s584
          %s586 = smul.addr %s585, 8
          %s587 = scalar_lea.vmem %s0, %s586
        $region84: #{tpu_custom_call.1} parent=79 // pred_fallthru
          _
        // Predicated region
        $region85: #{tpu_custom_call.1} parent=79 // pred_check
          %p588 = pneg %p90
        $region86: #{tpu_custom_call.1} parent=79 // pred_check_branch
          %590 = sbr.rel (%p588) target = $region88
        $region87: #{tpu_custom_call.1} parent=79 // pred_region
          %p591 = scmp.lt.s32.totalorder %s37, 1
          %s592 = scalar_select %p591, %s37, 1
          %s593 = smul.addr %s592, 2
          %s594 = smul.addr %s593, 4
          %s595 = scalar_lea.vmem %s1, %s594
        $region88: #{tpu_custom_call.1} parent=79 // pred_fallthru
          _
      $region80: #{tpu_custom_call.1} parent=5 // pred_fallthru
        _
      %p596 = scmp.le.s32.totalorder 1, %s30
      %p597 = scmp.lt.s32.totalorder %s30, 5
      %p598 = pnand %p596, %p597
      %p599 = pneg %p598
      // Predicated region
      $region89: #{tpu_custom_call.1} parent=5 // pred_check
        _
      $region90: #{tpu_custom_call.1} parent=5 // pred_check_branch
        %601 = sbr.rel (%p598) target = $region92
      $region91: #{tpu_custom_call.1} parent=5 // pred_region
        %s602 = ssub.s32 %s30, 1
        // Predicated region
        $region93: #{tpu_custom_call.1} parent=91 // pred_check
          %p603 = pneg %p159
        $region94: #{tpu_custom_call.1} parent=91 // pred_check_branch
          %605 = sbr.rel (%p603) target = $region96
        $region95: #{tpu_custom_call.1} parent=91 // pred_region
          %606 = dma.done [#allocation6], 256
        $region96: #{tpu_custom_call.1} parent=91 // pred_fallthru
          _
        // Predicated region
        $region97: #{tpu_custom_call.1} parent=91 // pred_check
          %p607 = pneg %p201
        $region98: #{tpu_custom_call.1} parent=91 // pred_check_branch
          %609 = sbr.rel (%p607) target = $region100
        $region99: #{tpu_custom_call.1} parent=91 // pred_region
          %610 = dma.done [#allocation9], 256
        $region100: #{tpu_custom_call.1} parent=91 // pred_fallthru
          _
        // Predicated region
        $region101: #{tpu_custom_call.1} parent=91 // pred_check
          %p611 = pneg %p243
        $region102: #{tpu_custom_call.1} parent=91 // pred_check_branch
          %613 = sbr.rel (%p611) target = $region104
        $region103: #{tpu_custom_call.1} parent=91 // pred_region
          %614 = dma.done [#allocation9], 256
        $region104: #{tpu_custom_call.1} parent=91 // pred_fallthru
          _
        // Predicated region
        $region105: #{tpu_custom_call.1} parent=91 // pred_check
          %p615 = pneg %p285
        $region106: #{tpu_custom_call.1} parent=91 // pred_check_branch
          %617 = sbr.rel (%p615) target = $region108
        $region107: #{tpu_custom_call.1} parent=91 // pred_region
          %618 = dma.done [#allocation12], 256
        $region108: #{tpu_custom_call.1} parent=91 // pred_fallthru
          _
        // Predicated region
        $region109: #{tpu_custom_call.1} parent=91 // pred_check
          %p619 = pneg %p369
        $region110: #{tpu_custom_call.1} parent=91 // pred_check_branch
          %621 = sbr.rel (%p619) target = $region112
        $region111: #{tpu_custom_call.1} parent=91 // pred_region
          %622 = dma.done [#allocation12], 256
        $region112: #{tpu_custom_call.1} parent=91 // pred_fallthru
          _
        %p623 = scmp.lt.s32.totalorder %s39, 1
        %s624 = scalar_select %p623, %s39, 1
        %p625 = scmp.lt.s32.totalorder %s40, 1
        %s626 = scalar_select %p625, %s40, 1
        %s627 = smul.addr %s624, 2
        %s628 = sadd.s32 %s626, %s627
        %s629 = smul.addr %s628, 8
        %s630 = scalar_lea.vmem %s0, %s629
        %p631 = pneg %p70
        %p632 = pneg %p67
        %p633 = scmp.lt.s32.totalorder %s39, 1
        %s634 = scalar_select %p633, %s39, 1
        %s635 = smul.addr %s634, 2
        %s636 = smul.addr %s635, 4
        %s637 = scalar_lea.vmem %s1, %s636
        %p638 = pneg %p96
        %p639 = pneg %p93
        %p640 = pneg %p117
        %p641 = pneg %p114
        %p642 = pneg %p138
        %p643 = pneg %p135
        %p644 = pneg %p159
        %p645 = pneg %p156
        %p646 = pneg %p180
        %p647 = pneg %p177
        %p648 = pneg %p201
        %p649 = pneg %p198
        %p650 = pneg %p222
        %p651 = pneg %p219
        %p652 = pneg %p243
        %p653 = pneg %p240
        %p654 = pneg %p264
        %p655 = pneg %p261
        %p656 = pneg %p285
        %p657 = pneg %p282
        %p658 = pneg %p306
        %p659 = pneg %p303
        %p660 = pneg %p327
        %p661 = pneg %p324
        %p662 = pneg %p348
        %p663 = pneg %p345
        %p664 = pneg %p369
        %p665 = pneg %p366
        %p666 = pneg %p390
        %p667 = pneg %p387
        %p668 = pneg %p411
        %p669 = pneg %p408
        %p670 = pneg %p432
        %p671 = pneg %p429
        %p672 = pneg %p460
        %p673 = pneg %p457
        %s674 = sand.u32 %s447, 1
        %s675 = scalar_lea.sflag [#allocation7], %s674
        %s676 = sand.u32 %s447, 1
        %s677 = smul.addr %s676, 8
        %s678 = scalar_lea.vmem [#allocation14], %s677
        %p679 = scmp.lt.s32.totalorder %s39, 1
        %s680 = scalar_select %p679, %s39, 1
        %p681 = scmp.lt.s32.totalorder %s40, 1
        %s682 = scalar_select %p681, %s40, 1
        %s683 = smul.addr %s680, 2
        %s684 = sadd.s32 %s682, %s683
        %s685 = smul.addr %s684, 8
        %s686 = scalar_lea.vmem %s0, %s685
        %p687 = scmp.lt.s32.totalorder %s39, 1
        %s688 = scalar_select %p687, %s39, 1
        %s689 = smul.addr %s688, 2
        %s690 = smul.addr %s689, 4
        %s691 = scalar_lea.vmem %s1, %s690
        %v693 = vld [vmem:[%s686] sm:$0xff]
        %v694 = vld [vmem:[%s2] sm:$0x1]
        %v695 = vld [vmem:[%s3] sm:$0x1]
        %p696 = scmp.eq.s32.totalorder %s40, 0
        // Predicated region
        $region113: #{tpu_custom_call.1} parent=91 // pred_check
          %p697 = pneg %p696
        $region114: #{tpu_custom_call.1} parent=91 // pred_check_branch
          %699 = sbr.rel (%p697) target = $region116
        $region115: #{tpu_custom_call.1} parent=91 // pred_region
          %v700 = vld [vmem:[%s691] sm:$0xf]
          %v701 = vld [vmem:[%s691 + $0x4] sm:$0xf]
          %v702 = vunpack.c.l.bf16 %v700
          %v703 = vunpack.c.l.bf16 %v701
          %vm704 = vcmask 261120
          %v705 = vsel %vm704, %v702, 0.0
          %706 = vadd.xlane.f32.xlu0 %v705
          %v707 = vpop.xlane.xlu0 %706
          %v708 = vsel %vm704, %v703, 0.0
          %709 = vadd.xlane.f32.xlu0 %v708
          %v710 = vpop.xlane.xlu0 %709
          %v711 = vrcp.pop 32.0
          %v712 = vmul.f32 %v707, %v711
          %v713 = vmul.f32 %v710, %v711
          %v714 = vsub.f32 %v702, %v712
          %v715 = vsub.f32 %v703, %v713
          %v716 = vmul.f32 %v714, %v714
          %v717 = vmul.f32 %v715, %v715
          %v718 = vsel %vm704, %v716, 0.0
          %719 = vadd.xlane.f32.xlu0 %v718
          %v720 = vpop.xlane.xlu0 %719
          %v721 = vsel %vm704, %v717, 0.0
          %722 = vadd.xlane.f32.xlu0 %v721
          %v723 = vpop.xlane.xlu0 %722
          %v724 = vmul.f32 %v720, %v711
          %v725 = vmul.f32 %v723, %v711
          %v726 = vadd.f32 %v724, 1e-05
          %v727 = vadd.f32 %v725, 1e-05
          %v728 = vrsqrt.pop %v726
          %v729 = vrsqrt.pop %v727
          %v730 = vmul.f32 %v714, %v728
          %v731 = vmul.f32 %v715, %v729
          %v733 = vlaneseq
          %v734 = vshrl.u32 %v733, 7
          %v735 = vsub.s32 0, %v734
          %v736 = vrot.slane %v694, %v735
          %v738 = vmul.f32 %v730, %v736
          %v739 = vmul.f32 %v731, %v736
          %v741 = vlaneseq
          %v742 = vshrl.u32 %v741, 7
          %v743 = vsub.s32 0, %v742
          %v744 = vrot.slane %v695, %v743
          %v746 = vadd.f32 %v738, %v744
          %v747 = vadd.f32 %v739, %v744
          %v748 = vpack.c.bf16 %v747, %v746
          %v749 = vld [vmem:[#allocation8] sm:$0xf]
          %v750 = vld [vmem:[#allocation8 + $0x4] sm:$0xf]
          %v751 = vld [vmem:[#allocation8 + $0x8] sm:$0xf]
          %v752 = vld [vmem:[#allocation8 + $0xc] sm:$0xf]
          %v753 = vld [vmem:[%s7] sm:$0x1]
          %v755 = vlaneseq
          %v756 = vshrl.u32 %v755, 7
          %v757 = vsub.s32 0, %v756
          %v758 = vrot.slane %v753, %v757
          %v764 = vunpack.c.l.b16 %v749
          %v765 = vunpack.c.l.b16 %v750
          %v766 = vunpack.c.l.b16 %v751
          %v767 = vunpack.c.l.b16 %v752
          %v768 = vpack.c.b16 %v765, %v764
          %v769 = vpack.c.b16 %v767, %v766
          %v773 = vsel %vm704, %v748, 0
          %775 = vmatprep.subr.bf16.mxu0 0
          %776 = vmatpush1.bf16.msra.mxu0 0
          %777 = vmatprep.subr.bf16.mxu0 0
          %778 = vmatpush1.bf16.msra.mxu0 0
          %779 = vmatprep.subr.bf16.mxu0 0
          %780 = vmatpush1.bf16.msra.mxu0 0
          %781 = vmatprep.subr.bf16.mxu0 0
          %782 = vmatpush1.bf16.msra.mxu0 0
          %783 = vmatprep.subr.bf16.mxu0 0
          %784 = vmatpush1.bf16.msra.mxu0 0
          %785 = vmatprep.subr.bf16.mxu0 0
          %786 = vmatpush1.bf16.msra.mxu0 0
          %787 = vmatprep.subr.bf16.mxu0 0
          %788 = vmatpush1.bf16.msra.mxu0 %v769
          %789 = vmatprep.subr.bf16.mxu0 0
          %790 = vmatpush1.bf16.msra.mxu0 %v768
          %791 = vmatprep.subr.bf16.mxu0 0
          %792 = vmatpush2.bf16.msra.mxu0 0
          %793 = vmatprep.subr.bf16.mxu0 0
          %794 = vmatpush2.bf16.msra.mxu0 0
          %795 = vmatprep.subr.bf16.mxu0 0
          %796 = vmatpush2.bf16.msra.mxu0 0
          %797 = vmatprep.subr.bf16.mxu0 0
          %798 = vmatpush2.bf16.msra.mxu0 0
          %799 = vmatprep.subr.bf16.mxu0 0
          %800 = vmatpush2.bf16.msra.mxu0 0
          %801 = vmatprep.subr.bf16.mxu0 0
          %802 = vmatpush2.bf16.msra.mxu0 0
          %803 = vmatprep.subr.bf16.mxu0 0
          %804 = vmatpush2.bf16.msra.mxu0 0
          %805 = vmatprep.subr.bf16.mxu0 0
          %806 = vmatpush2.bf16.msra.mxu0 0
          %807 = vmatprep.mubr.bf16.mxu0 0
          %808 = vmatmul.mubr.bf16.gmra.mxu0 %v773
          %v809 = vpop.f32.mrf.mxu0
          %v810 = vadd.f32 %v758, %v809
          %v811 = vpop.f32.mrf.mxu0
          %v812 = vpop.f32.mrf.mxu0
          %v813 = vadd.f32 %v758, %v812
          %v814 = vpop.f32.mrf.mxu0
          %815 = vdwg.mxu0
          %v816 = vld [vmem:[#allocation10] sm:$0xf]
          %v817 = vld [vmem:[#allocation10 + $0x4] sm:$0xf]
          %v818 = vld [vmem:[#allocation10 + $0x8] sm:$0xf]
          %v819 = vld [vmem:[#allocation10 + $0xc] sm:$0xf]
          %v820 = vld [vmem:[%s9] sm:$0x1]
          %v822 = vlaneseq
          %v823 = vshrl.u32 %v822, 7
          %v824 = vsub.s32 0, %v823
          %v825 = vrot.slane %v820, %v824
          %v831 = vunpack.c.l.b16 %v816
          %v832 = vunpack.c.l.b16 %v817
          %v833 = vunpack.c.l.b16 %v818
          %v834 = vunpack.c.l.b16 %v819
          %v835 = vpack.c.b16 %v832, %v831
          %v836 = vpack.c.b16 %v834, %v833
          %839 = vmatprep.subr.bf16.mxu0 0
          %840 = vmatpush1.bf16.msra.mxu0 0
          %841 = vmatprep.subr.bf16.mxu0 0
          %842 = vmatpush1.bf16.msra.mxu0 0
          %843 = vmatprep.subr.bf16.mxu0 0
          %844 = vmatpush1.bf16.msra.mxu0 0
          %845 = vmatprep.subr.bf16.mxu0 0
          %846 = vmatpush1.bf16.msra.mxu0 0
          %847 = vmatprep.subr.bf16.mxu0 0
          %848 = vmatpush1.bf16.msra.mxu0 0
          %849 = vmatprep.subr.bf16.mxu0 0
          %850 = vmatpush1.bf16.msra.mxu0 0
          %851 = vmatprep.subr.bf16.mxu0 0
          %852 = vmatpush1.bf16.msra.mxu0 %v836
          %853 = vmatprep.subr.bf16.mxu0 0
          %854 = vmatpush1.bf16.msra.mxu0 %v835
          %855 = vmatprep.subr.bf16.mxu0 0
          %856 = vmatpush2.bf16.msra.mxu0 0
          %857 = vmatprep.subr.bf16.mxu0 0
          %858 = vmatpush2.bf16.msra.mxu0 0
          %859 = vmatprep.subr.bf16.mxu0 0
          %860 = vmatpush2.bf16.msra.mxu0 0
          %861 = vmatprep.subr.bf16.mxu0 0
          %862 = vmatpush2.bf16.msra.mxu0 0
          %863 = vmatprep.subr.bf16.mxu0 0
          %864 = vmatpush2.bf16.msra.mxu0 0
          %865 = vmatprep.subr.bf16.mxu0 0
          %866 = vmatpush2.bf16.msra.mxu0 0
          %867 = vmatprep.subr.bf16.mxu0 0
          %868 = vmatpush2.bf16.msra.mxu0 0
          %869 = vmatprep.subr.bf16.mxu0 0
          %870 = vmatpush2.bf16.msra.mxu0 0
          %871 = vmatprep.mubr.bf16.mxu0 0
          %872 = vmatmul.mubr.bf16.gmra.mxu0 %v773
          %v873 = vpop.f32.mrf.mxu0
          %v874 = vadd.f32 %v825, %v873
          %v875 = vpop.f32.mrf.mxu0
          %v876 = vpop.f32.mrf.mxu0
          %v877 = vadd.f32 %v825, %v876
          %v878 = vpop.f32.mrf.mxu0
          %879 = vdwg.mxu0
          %v880 = vpack.c.bf16 %v813, %v810
          %v882 = vunpack.c.l.b16 %v880
          %v883 = vunpack.c.h.b16 %v880
          %v884 = vpack.c.b16 %v882, %v882
          %v885 = vpack.c.b16 %v883, %v883
          %vm888 = vcmask 257024
          %889 = vst.msk [vmem:[#allocation2] sm:$0xf] %vm888, %v884
          %890 = vst.msk [vmem:[#allocation2 + $0x4] sm:$0xf] %vm888, %v885
          %v891 = vpack.c.bf16 %v877, %v874
          %v893 = vunpack.c.l.b16 %v891
          %v894 = vunpack.c.h.b16 %v891
          %v895 = vpack.c.b16 %v893, %v893
          %v896 = vpack.c.b16 %v894, %v894
          %899 = vst.msk [vmem:[#allocation3] sm:$0xf] %vm888, %v895
          %900 = vst.msk [vmem:[#allocation3 + $0x4] sm:$0xf] %vm888, %v896
        $region116: #{tpu_custom_call.1} parent=91 // pred_fallthru
          _
        %vm901 = vcmask 261120
        %v902 = vsel %vm901, %v693, 0.0
        %903 = vadd.xlane.f32.xlu0 %v902
        %v904 = vpop.xlane.xlu0 %903
        %v905 = vrcp.pop 32.0
        %v906 = vmul.f32 %v904, %v905
        %v907 = vsub.f32 %v693, %v906
        %v908 = vmul.f32 %v907, %v907
        %v909 = vsel %vm901, %v908, 0.0
        %910 = vadd.xlane.f32.xlu0 %v909
        %v911 = vpop.xlane.xlu0 %910
        %v912 = vmul.f32 %v911, %v905
        %v913 = vadd.f32 %v912, 1e-05
        %v914 = vrsqrt.pop %v913
        %v915 = vmul.f32 %v907, %v914
        %v917 = vlaneseq
        %v918 = vshrl.u32 %v917, 7
        %v919 = vsub.s32 0, %v918
        %v920 = vrot.slane %v694, %v919
        %v922 = vmul.f32 %v915, %v920
        %v924 = vlaneseq
        %v925 = vshrl.u32 %v924, 7
        %v926 = vsub.s32 0, %v925
        %v927 = vrot.slane %v695, %v926
        %v929 = vadd.f32 %v922, %v927
        %v930 = vpack.c.bf16 %v929, %v929
        %v931 = vld [vmem:[#allocation5] sm:$0xf]
        %v932 = vld [vmem:[#allocation5 + $0x4] sm:$0xf]
        %v933 = vld [vmem:[#allocation5 + $0x8] sm:$0xf]
        %v934 = vld [vmem:[#allocation5 + $0xc] sm:$0xf]
        %v935 = vld [vmem:[%s5] sm:$0x1]
        %v937 = vlaneseq
        %v938 = vshrl.u32 %v937, 7
        %v939 = vsub.s32 0, %v938
        %v940 = vrot.slane %v935, %v939
        %v946 = vunpack.c.l.b16 %v931
        %v947 = vunpack.c.l.b16 %v932
        %v948 = vunpack.c.l.b16 %v933
        %v949 = vunpack.c.l.b16 %v934
        %v950 = vpack.c.b16 %v947, %v946
        %v951 = vpack.c.b16 %v949, %v948
        %v955 = vsel %vm901, %v930, 0
        %957 = vmatprep.subr.bf16.mxu0 0
        %958 = vmatpush1.bf16.msra.mxu0 0
        %959 = vmatprep.subr.bf16.mxu0 0
        %960 = vmatpush1.bf16.msra.mxu0 0
        %961 = vmatprep.subr.bf16.mxu0 0
        %962 = vmatpush1.bf16.msra.mxu0 0
        %963 = vmatprep.subr.bf16.mxu0 0
        %964 = vmatpush1.bf16.msra.mxu0 0
        %965 = vmatprep.subr.bf16.mxu0 0
        %966 = vmatpush1.bf16.msra.mxu0 0
        %967 = vmatprep.subr.bf16.mxu0 0
        %968 = vmatpush1.bf16.msra.mxu0 0
        %969 = vmatprep.subr.bf16.mxu0 0
        %970 = vmatpush1.bf16.msra.mxu0 %v951
        %971 = vmatprep.subr.bf16.mxu0 0
        %972 = vmatpush1.bf16.msra.mxu0 %v950
        %973 = vmatprep.subr.bf16.mxu0 0
        %974 = vmatpush2.bf16.msra.mxu0 0
        %975 = vmatprep.subr.bf16.mxu0 0
        %976 = vmatpush2.bf16.msra.mxu0 0
        %977 = vmatprep.subr.bf16.mxu0 0
        %978 = vmatpush2.bf16.msra.mxu0 0
        %979 = vmatprep.subr.bf16.mxu0 0
        %980 = vmatpush2.bf16.msra.mxu0 0
        %981 = vmatprep.subr.bf16.mxu0 0
        %982 = vmatpush2.bf16.msra.mxu0 0
        %983 = vmatprep.subr.bf16.mxu0 0
        %984 = vmatpush2.bf16.msra.mxu0 0
        %985 = vmatprep.subr.bf16.mxu0 0
        %986 = vmatpush2.bf16.msra.mxu0 0
        %987 = vmatprep.subr.bf16.mxu0 0
        %988 = vmatpush2.bf16.msra.mxu0 0
        %989 = vmatprep.mubr.bf16.mxu0 0
        %990 = vmatmul.mubr.bf16.gmra.mxu0 %v955
        %v991 = vpop.f32.mrf.mxu0
        %v992 = vadd.f32 %v940, %v991
        %v993 = vpop.f32.mrf.mxu0
        %v994 = vpop.f32.mrf.mxu0
        %v995 = vpop.f32.mrf.mxu0
        %996 = vdwg.mxu0
        %v997 = vpack.c.bf16 %v992, %v992
        %v998 = vlaneseq
        %v999 = vand.u32 %v998, 127
        %vm1000 = vcmp.lt.s32.totalorder %v999, 12
        %v1001 = vld [vmem:[#allocation2] sm:$0xf]
        %v1002 = vld [vmem:[#allocation2 + $0x4] sm:$0xf]
        %v1005 = vunpack.c.l.b16 %v1001
        %v1006 = vunpack.c.l.b16 %v1002
        %v1007 = vpack.c.b16 %v1006, %v1005
        %vm1008 = vcmask 64512
        %v1010 = vsel %vm1008, %v997, 0
        %v1013 = vsel %vm1008, %v1007, 0
        %1015 = vmatprep.subr.bf16.mxu0 0
        %1016 = vmatpush1.bf16.xpose.msra.mxu0 0
        %1017 = vmatprep.subr.bf16.mxu0 0
        %1018 = vmatpush1.bf16.xpose.msra.mxu0 0
        %1019 = vmatprep.subr.bf16.mxu0 0
        %1020 = vmatpush1.bf16.xpose.msra.mxu0 0
        %1021 = vmatprep.subr.bf16.mxu0 0
        %1022 = vmatpush1.bf16.xpose.msra.mxu0 0
        %1023 = vmatprep.subr.bf16.mxu0 0
        %1024 = vmatpush1.bf16.xpose.msra.mxu0 0
        %1025 = vmatprep.subr.bf16.mxu0 0
        %1026 = vmatpush1.bf16.xpose.msra.mxu0 0
        %1027 = vmatprep.subr.bf16.mxu0 0
        %1028 = vmatpush1.bf16.xpose.msra.mxu0 0
        %1029 = vmatprep.subr.bf16.mxu0 0
        %1030 = vmatpush1.bf16.xpose.msra.mxu0 %v1013
        %1031 = vmatprep.subr.bf16.mxu0 0
        %1032 = vmatpush2.bf16.xpose.msra.mxu0 0
        %1033 = vmatprep.subr.bf16.mxu0 0
        %1034 = vmatpush2.bf16.xpose.msra.mxu0 0
        %1035 = vmatprep.subr.bf16.mxu0 0
        %1036 = vmatpush2.bf16.xpose.msra.mxu0 0
        %1037 = vmatprep.subr.bf16.mxu0 0
        %1038 = vmatpush2.bf16.xpose.msra.mxu0 0
        %1039 = vmatprep.subr.bf16.mxu0 0
        %1040 = vmatpush2.bf16.xpose.msra.mxu0 0
        %1041 = vmatprep.subr.bf16.mxu0 0
        %1042 = vmatpush2.bf16.xpose.msra.mxu0 0
        %1043 = vmatprep.subr.bf16.mxu0 0
        %1044 = vmatpush2.bf16.xpose.msra.mxu0 0
        %1045 = vmatprep.subr.bf16.mxu0 0
        %1046 = vmatpush2.bf16.xpose.msra.mxu0 0
        %1047 = vmatprep.mubr.bf16.mxu0 0
        %1048 = vmatmul.mubr.bf16.gmra.mxu0 %v1010
        %v1049 = vpop.f32.mrf.mxu0
        %v1050 = vadd.f32 0.0, %v1049
        %v1051 = vpop.f32.mrf.mxu0
        %v1052 = vpop.f32.mrf.mxu0
        %v1053 = vpop.f32.mrf.mxu0
        %1054 = vdwg.mxu0
        %v1055 = vsel %vm1000, %v1050, -1e+30
        %vm1056 = vcmask 130048
        %v1057 = vsel %vm1056, %v1055, -inf
        %1058 = vmax.xlane.f32.xlu0 %v1057
        %v1059 = vpop.xlane.xlu0 %1058
        %v1060 = vsub.f32 %v1055, %v1059
        %v1061 = vmul.f32 %v1060, 1.442695
        %v1062 = vpow.pop %v1061
        %v1063 = vsel %vm1056, %v1062, 0.0
        %1064 = vadd.xlane.f32.xlu0 %v1063
        %v1065 = vpop.xlane.xlu0 %1064
        %v1066 = vpack.c.bf16 %v1062, %v1062
        %v1067 = vld [vmem:[#allocation3] sm:$0xf]
        %v1068 = vld [vmem:[#allocation3 + $0x4] sm:$0xf]
        %v1071 = vunpack.c.l.b16 %v1067
        %v1072 = vunpack.c.l.b16 %v1068
        %v1073 = vpack.c.b16 %v1072, %v1071
        %v1076 = vsel %vm1056, %v1066, 0
        %1078 = vmatprep.subr.bf16.mxu0 0
        %1079 = vmatpush1.bf16.msra.mxu0 0
        %1080 = vmatprep.subr.bf16.mxu0 0
        %1081 = vmatpush1.bf16.msra.mxu0 0
        %1082 = vmatprep.subr.bf16.mxu0 0
        %1083 = vmatpush1.bf16.msra.mxu0 0
        %1084 = vmatprep.subr.bf16.mxu0 0
        %1085 = vmatpush1.bf16.msra.mxu0 0
        %1086 = vmatprep.subr.bf16.mxu0 0
        %1087 = vmatpush1.bf16.msra.mxu0 0
        %1088 = vmatprep.subr.bf16.mxu0 0
        %1089 = vmatpush1.bf16.msra.mxu0 0
        %1090 = vmatprep.subr.bf16.mxu0 0
        %1091 = vmatpush1.bf16.msra.mxu0 0
        %1092 = vmatprep.subr.bf16.mxu0 0
        %1093 = vmatpush1.bf16.msra.mxu0 %v1073
        %1094 = vmatprep.subr.bf16.mxu0 0
        %1095 = vmatpush2.bf16.msra.mxu0 0
        %1096 = vmatprep.subr.bf16.mxu0 0
        %1097 = vmatpush2.bf16.msra.mxu0 0
        %1098 = vmatprep.subr.bf16.mxu0 0
        %1099 = vmatpush2.bf16.msra.mxu0 0
        %1100 = vmatprep.subr.bf16.mxu0 0
        %1101 = vmatpush2.bf16.msra.mxu0 0
        %1102 = vmatprep.subr.bf16.mxu0 0
        %1103 = vmatpush2.bf16.msra.mxu0 0
        %1104 = vmatprep.subr.bf16.mxu0 0
        %1105 = vmatpush2.bf16.msra.mxu0 0
        %1106 = vmatprep.subr.bf16.mxu0 0
        %1107 = vmatpush2.bf16.msra.mxu0 0
        %1108 = vmatprep.subr.bf16.mxu0 0
        %1109 = vmatpush2.bf16.msra.mxu0 0
        %1110 = vmatprep.mubr.bf16.mxu0 0
        %1111 = vmatmul.mubr.bf16.gmra.mxu0 %v1076
        %v1112 = vpop.f32.mrf.mxu0
        %v1113 = vadd.f32 0.0, %v1112
        %v1114 = vpop.f32.mrf.mxu0
        %v1115 = vpop.f32.mrf.mxu0
        %v1116 = vpop.f32.mrf.mxu0
        %1117 = vdwg.mxu0
        %v1118 = vrcp.pop %v1065
        %v1119 = vmul.f32 %v1113, %v1118
        %1121 = vrot.lane.b32.xlu0 %v997, 120
        %v1122 = vpop.permute.xlu0 %1121
        %1123 = vrot.lane.b32.xlu0 %v1007, 120
        %v1124 = vpop.permute.xlu0 %1123
        %v1126 = vsel %vm1008, %v1122, 0
        %v1129 = vsel %vm1008, %v1124, 0
        %1131 = vmatprep.subr.bf16.mxu0 0
        %1132 = vmatpush1.bf16.xpose.msra.mxu0 0
        %1133 = vmatprep.subr.bf16.mxu0 0
        %1134 = vmatpush1.bf16.xpose.msra.mxu0 0
        %1135 = vmatprep.subr.bf16.mxu0 0
        %1136 = vmatpush1.bf16.xpose.msra.mxu0 0
        %1137 = vmatprep.subr.bf16.mxu0 0
        %1138 = vmatpush1.bf16.xpose.msra.mxu0 0
        %1139 = vmatprep.subr.bf16.mxu0 0
        %1140 = vmatpush1.bf16.xpose.msra.mxu0 0
        %1141 = vmatprep.subr.bf16.mxu0 0
        %1142 = vmatpush1.bf16.xpose.msra.mxu0 0
        %1143 = vmatprep.subr.bf16.mxu0 0
        %1144 = vmatpush1.bf16.xpose.msra.mxu0 0
        %1145 = vmatprep.subr.bf16.mxu0 0
        %1146 = vmatpush1.bf16.xpose.msra.mxu0 %v1129
        %1147 = vmatprep.subr.bf16.mxu0 0
        %1148 = vmatpush2.bf16.xpose.msra.mxu0 0
        %1149 = vmatprep.subr.bf16.mxu0 0
        %1150 = vmatpush2.bf16.xpose.msra.mxu0 0
        %1151 = vmatprep.subr.bf16.mxu0 0
        %1152 = vmatpush2.bf16.xpose.msra.mxu0 0
        %1153 = vmatprep.subr.bf16.mxu0 0
        %1154 = vmatpush2.bf16.xpose.msra.mxu0 0
        %1155 = vmatprep.subr.bf16.mxu0 0
        %1156 = vmatpush2.bf16.xpose.msra.mxu0 0
        %1157 = vmatprep.subr.bf16.mxu0 0
        %1158 = vmatpush2.bf16.xpose.msra.mxu0 0
        %1159 = vmatprep.subr.bf16.mxu0 0
        %1160 = vmatpush2.bf16.xpose.msra.mxu0 0
        %1161 = vmatprep.subr.bf16.mxu0 0
        %1162 = vmatpush2.bf16.xpose.msra.mxu0 0
        %1163 = vmatprep.mubr.bf16.mxu0 0
        %1164 = vmatmul.mubr.bf16.gmra.mxu0 %v1126
        %v1165 = vpop.f32.mrf.mxu0
        %v1166 = vadd.f32 0.0, %v1165
        %v1167 = vpop.f32.mrf.mxu0
        %v1168 = vpop.f32.mrf.mxu0
        %v1169 = vpop.f32.mrf.mxu0
        %1170 = vdwg.mxu0
        %v1171 = vsel %vm1000, %v1166, -1e+30
        %v1172 = vsel %vm1056, %v1171, -inf
        %1173 = vmax.xlane.f32.xlu0 %v1172
        %v1174 = vpop.xlane.xlu0 %1173
        %v1175 = vsub.f32 %v1171, %v1174
        %v1176 = vmul.f32 %v1175, 1.442695
        %v1177 = vpow.pop %v1176
        %v1178 = vsel %vm1056, %v1177, 0.0
        %1179 = vadd.xlane.f32.xlu0 %v1178
        %v1180 = vpop.xlane.xlu0 %1179
        %v1181 = vpack.c.bf16 %v1177, %v1177
        %1182 = vrot.lane.b32.xlu0 %v1073, 120
        %v1183 = vpop.permute.xlu0 %1182
        %v1186 = vsel %vm1056, %v1181, 0
        %1188 = vmatprep.subr.bf16.mxu0 0
        %1189 = vmatpush1.bf16.msra.mxu0 0
        %1190 = vmatprep.subr.bf16.mxu0 0
        %1191 = vmatpush1.bf16.msra.mxu0 0
        %1192 = vmatprep.subr.bf16.mxu0 0
        %1193 = vmatpush1.bf16.msra.mxu0 0
        %1194 = vmatprep.subr.bf16.mxu0 0
        %1195 = vmatpush1.bf16.msra.mxu0 0
        %1196 = vmatprep.subr.bf16.mxu0 0
        %1197 = vmatpush1.bf16.msra.mxu0 0
        %1198 = vmatprep.subr.bf16.mxu0 0
        %1199 = vmatpush1.bf16.msra.mxu0 0
        %1200 = vmatprep.subr.bf16.mxu0 0
        %1201 = vmatpush1.bf16.msra.mxu0 0
        %1202 = vmatprep.subr.bf16.mxu0 0
        %1203 = vmatpush1.bf16.msra.mxu0 %v1183
        %1204 = vmatprep.subr.bf16.mxu0 0
        %1205 = vmatpush2.bf16.msra.mxu0 0
        %1206 = vmatprep.subr.bf16.mxu0 0
        %1207 = vmatpush2.bf16.msra.mxu0 0
        %1208 = vmatprep.subr.bf16.mxu0 0
        %1209 = vmatpush2.bf16.msra.mxu0 0
        %1210 = vmatprep.subr.bf16.mxu0 0
        %1211 = vmatpush2.bf16.msra.mxu0 0
        %1212 = vmatprep.subr.bf16.mxu0 0
        %1213 = vmatpush2.bf16.msra.mxu0 0
        %1214 = vmatprep.subr.bf16.mxu0 0
        %1215 = vmatpush2.bf16.msra.mxu0 0
        %1216 = vmatprep.subr.bf16.mxu0 0
        %1217 = vmatpush2.bf16.msra.mxu0 0
        %1218 = vmatprep.subr.bf16.mxu0 0
        %1219 = vmatpush2.bf16.msra.mxu0 0
        %1220 = vmatprep.mubr.bf16.mxu0 0
        %1221 = vmatmul.mubr.bf16.gmra.mxu0 %v1186
        %v1222 = vpop.f32.mrf.mxu0
        %v1223 = vadd.f32 0.0, %v1222
        %v1224 = vpop.f32.mrf.mxu0
        %v1225 = vpop.f32.mrf.mxu0
        %v1226 = vpop.f32.mrf.mxu0
        %1227 = vdwg.mxu0
        %v1228 = vrcp.pop %v1180
        %v1229 = vmul.f32 %v1223, %v1228
        %1231 = vrot.lane.b32.xlu0 %v1229, 8
        %v1232 = vpop.permute.xlu0 %1231
        %v1234 = vsel %vm1008, %v1119, %v1232
        %v1235 = vpack.c.bf16 %v1234, %v1234
        %vm1236 = vcmask 125952
        %1237 = vst.msk [vmem:[#allocation4] sm:$0xf] %vm1236, %v1235
        %v1238 = vld [vmem:[#allocation2] sm:$0xf]
        %v1239 = vld [vmem:[#allocation2 + $0x4] sm:$0xf]
        %1240 = vrot.lane.b32.xlu0 %v997, 112
        %v1241 = vpop.permute.xlu0 %1240
        %v1244 = vunpack.c.l.b16 %v1238
        %v1245 = vunpack.c.l.b16 %v1239
        %v1246 = vpack.c.b16 %v1245, %v1244
        %1247 = vrot.lane.b32.xlu0 %v1246, 112
        %v1248 = vpop.permute.xlu0 %1247
        %v1250 = vsel %vm1008, %v1241, 0
        %v1253 = vsel %vm1008, %v1248, 0
        %1255 = vmatprep.subr.bf16.mxu0 0
        %1256 = vmatpush1.bf16.xpose.msra.mxu0 0
        %1257 = vmatprep.subr.bf16.mxu0 0
        %1258 = vmatpush1.bf16.xpose.msra.mxu0 0
        %1259 = vmatprep.subr.bf16.mxu0 0
        %1260 = vmatpush1.bf16.xpose.msra.mxu0 0
        %1261 = vmatprep.subr.bf16.mxu0 0
        %1262 = vmatpush1.bf16.xpose.msra.mxu0 0
        %1263 = vmatprep.subr.bf16.mxu0 0
        %1264 = vmatpush1.bf16.xpose.msra.mxu0 0
        %1265 = vmatprep.subr.bf16.mxu0 0
        %1266 = vmatpush1.bf16.xpose.msra.mxu0 0
        %1267 = vmatprep.subr.bf16.mxu0 0
        %1268 = vmatpush1.bf16.xpose.msra.mxu0 0
        %1269 = vmatprep.subr.bf16.mxu0 0
        %1270 = vmatpush1.bf16.xpose.msra.mxu0 %v1253
        %1271 = vmatprep.subr.bf16.mxu0 0
        %1272 = vmatpush2.bf16.xpose.msra.mxu0 0
        %1273 = vmatprep.subr.bf16.mxu0 0
        %1274 = vmatpush2.bf16.xpose.msra.mxu0 0
        %1275 = vmatprep.subr.bf16.mxu0 0
        %1276 = vmatpush2.bf16.xpose.msra.mxu0 0
        %1277 = vmatprep.subr.bf16.mxu0 0
        %1278 = vmatpush2.bf16.xpose.msra.mxu0 0
        %1279 = vmatprep.subr.bf16.mxu0 0
        %1280 = vmatpush2.bf16.xpose.msra.mxu0 0
        %1281 = vmatprep.subr.bf16.mxu0 0
        %1282 = vmatpush2.bf16.xpose.msra.mxu0 0
        %1283 = vmatprep.subr.bf16.mxu0 0
        %1284 = vmatpush2.bf16.xpose.msra.mxu0 0
        %1285 = vmatprep.subr.bf16.mxu0 0
        %1286 = vmatpush2.bf16.xpose.msra.mxu0 0
        %1287 = vmatprep.mubr.bf16.mxu0 0
        %1288 = vmatmul.mubr.bf16.gmra.mxu0 %v1250
        %v1289 = vpop.f32.mrf.mxu0
        %v1290 = vadd.f32 0.0, %v1289
        %v1291 = vpop.f32.mrf.mxu0
        %v1292 = vpop.f32.mrf.mxu0
        %v1293 = vpop.f32.mrf.mxu0
        %1294 = vdwg.mxu0
        %v1295 = vsel %vm1000, %v1290, -1e+30
        %v1296 = vsel %vm1056, %v1295, -inf
        %1297 = vmax.xlane.f32.xlu0 %v1296
        %v1298 = vpop.xlane.xlu0 %1297
        %v1299 = vsub.f32 %v1295, %v1298
        %v1300 = vmul.f32 %v1299, 1.442695
        %v1301 = vpow.pop %v1300
        %v1302 = vsel %vm1056, %v1301, 0.0
        %1303 = vadd.xlane.f32.xlu0 %v1302
        %v1304 = vpop.xlane.xlu0 %1303
        %v1305 = vpack.c.bf16 %v1301, %v1301
        %v1306 = vld [vmem:[#allocation3] sm:$0xf]
        %v1307 = vld [vmem:[#allocation3 + $0x4] sm:$0xf]
        %v1310 = vunpack.c.l.b16 %v1306
        %v1311 = vunpack.c.l.b16 %v1307
        %v1312 = vpack.c.b16 %v1311, %v1310
        %1313 = vrot.lane.b32.xlu0 %v1312, 112
        %v1314 = vpop.permute.xlu0 %1313
        %v1317 = vsel %vm1056, %v1305, 0
        %1319 = vmatprep.subr.bf16.mxu0 0
        %1320 = vmatpush1.bf16.msra.mxu0 0
        %1321 = vmatprep.subr.bf16.mxu0 0
        %1322 = vmatpush1.bf16.msra.mxu0 0
        %1323 = vmatprep.subr.bf16.mxu0 0
        %1324 = vmatpush1.bf16.msra.mxu0 0
        %1325 = vmatprep.subr.bf16.mxu0 0
        %1326 = vmatpush1.bf16.msra.mxu0 0
        %1327 = vmatprep.subr.bf16.mxu0 0
        %1328 = vmatpush1.bf16.msra.mxu0 0
        %1329 = vmatprep.subr.bf16.mxu0 0
        %1330 = vmatpush1.bf16.msra.mxu0 0
        %1331 = vmatprep.subr.bf16.mxu0 0
        %1332 = vmatpush1.bf16.msra.mxu0 0
        %1333 = vmatprep.subr.bf16.mxu0 0
        %1334 = vmatpush1.bf16.msra.mxu0 %v1314
        %1335 = vmatprep.subr.bf16.mxu0 0
        %1336 = vmatpush2.bf16.msra.mxu0 0
        %1337 = vmatprep.subr.bf16.mxu0 0
        %1338 = vmatpush2.bf16.msra.mxu0 0
        %1339 = vmatprep.subr.bf16.mxu0 0
        %1340 = vmatpush2.bf16.msra.mxu0 0
        %1341 = vmatprep.subr.bf16.mxu0 0
        %1342 = vmatpush2.bf16.msra.mxu0 0
        %1343 = vmatprep.subr.bf16.mxu0 0
        %1344 = vmatpush2.bf16.msra.mxu0 0
        %1345 = vmatprep.subr.bf16.mxu0 0
        %1346 = vmatpush2.bf16.msra.mxu0 0
        %1347 = vmatprep.subr.bf16.mxu0 0
        %1348 = vmatpush2.bf16.msra.mxu0 0
        %1349 = vmatprep.subr.bf16.mxu0 0
        %1350 = vmatpush2.bf16.msra.mxu0 0
        %1351 = vmatprep.mubr.bf16.mxu0 0
        %1352 = vmatmul.mubr.bf16.gmra.mxu0 %v1317
        %v1353 = vpop.f32.mrf.mxu0
        %v1354 = vadd.f32 0.0, %v1353
        %v1355 = vpop.f32.mrf.mxu0
        %v1356 = vpop.f32.mrf.mxu0
        %v1357 = vpop.f32.mrf.mxu0
        %1358 = vdwg.mxu0
        %v1359 = vrcp.pop %v1304
        %v1360 = vmul.f32 %v1354, %v1359
        %1361 = vrot.lane.b32.xlu0 %v997, 104
        %v1362 = vpop.permute.xlu0 %1361
        %1363 = vrot.lane.b32.xlu0 %v1246, 104
        %v1364 = vpop.permute.xlu0 %1363
        %v1366 = vsel %vm1008, %v1362, 0
        %v1369 = vsel %vm1008, %v1364, 0
        %1371 = vmatprep.subr.bf16.mxu0 0
        %1372 = vmatpush1.bf16.xpose.msra.mxu0 0
        %1373 = vmatprep.subr.bf16.mxu0 0
        %1374 = vmatpush1.bf16.xpose.msra.mxu0 0
        %1375 = vmatprep.subr.bf16.mxu0 0
        %1376 = vmatpush1.bf16.xpose.msra.mxu0 0
        %1377 = vmatprep.subr.bf16.mxu0 0
        %1378 = vmatpush1.bf16.xpose.msra.mxu0 0
        %1379 = vmatprep.subr.bf16.mxu0 0
        %1380 = vmatpush1.bf16.xpose.msra.mxu0 0
        %1381 = vmatprep.subr.bf16.mxu0 0
        %1382 = vmatpush1.bf16.xpose.msra.mxu0 0
        %1383 = vmatprep.subr.bf16.mxu0 0
        %1384 = vmatpush1.bf16.xpose.msra.mxu0 0
        %1385 = vmatprep.subr.bf16.mxu0 0
        %1386 = vmatpush1.bf16.xpose.msra.mxu0 %v1369
        %1387 = vmatprep.subr.bf16.mxu0 0
        %1388 = vmatpush2.bf16.xpose.msra.mxu0 0
        %1389 = vmatprep.subr.bf16.mxu0 0
        %1390 = vmatpush2.bf16.xpose.msra.mxu0 0
        %1391 = vmatprep.subr.bf16.mxu0 0
        %1392 = vmatpush2.bf16.xpose.msra.mxu0 0
        %1393 = vmatprep.subr.bf16.mxu0 0
        %1394 = vmatpush2.bf16.xpose.msra.mxu0 0
        %1395 = vmatprep.subr.bf16.mxu0 0
        %1396 = vmatpush2.bf16.xpose.msra.mxu0 0
        %1397 = vmatprep.subr.bf16.mxu0 0
        %1398 = vmatpush2.bf16.xpose.msra.mxu0 0
        %1399 = vmatprep.subr.bf16.mxu0 0
        %1400 = vmatpush2.bf16.xpose.msra.mxu0 0
        %1401 = vmatprep.subr.bf16.mxu0 0
        %1402 = vmatpush2.bf16.xpose.msra.mxu0 0
        %1403 = vmatprep.mubr.bf16.mxu0 0
        %1404 = vmatmul.mubr.bf16.gmra.mxu0 %v1366
        %v1405 = vpop.f32.mrf.mxu0
        %v1406 = vadd.f32 0.0, %v1405
        %v1407 = vpop.f32.mrf.mxu0
        %v1408 = vpop.f32.mrf.mxu0
        %v1409 = vpop.f32.mrf.mxu0
        %1410 = vdwg.mxu0
        %v1411 = vsel %vm1000, %v1406, -1e+30
        %v1412 = vsel %vm1056, %v1411, -inf
        %1413 = vmax.xlane.f32.xlu0 %v1412
        %v1414 = vpop.xlane.xlu0 %1413
        %v1415 = vsub.f32 %v1411, %v1414
        %v1416 = vmul.f32 %v1415, 1.442695
        %v1417 = vpow.pop %v1416
        %v1418 = vsel %vm1056, %v1417, 0.0
        %1419 = vadd.xlane.f32.xlu0 %v1418
        %v1420 = vpop.xlane.xlu0 %1419
        %v1421 = vpack.c.bf16 %v1417, %v1417
        %1422 = vrot.lane.b32.xlu0 %v1312, 104
        %v1423 = vpop.permute.xlu0 %1422
        %v1426 = vsel %vm1056, %v1421, 0
        %1428 = vmatprep.subr.bf16.mxu0 0
        %1429 = vmatpush1.bf16.msra.mxu0 0
        %1430 = vmatprep.subr.bf16.mxu0 0
        %1431 = vmatpush1.bf16.msra.mxu0 0
        %1432 = vmatprep.subr.bf16.mxu0 0
        %1433 = vmatpush1.bf16.msra.mxu0 0
        %1434 = vmatprep.subr.bf16.mxu0 0
        %1435 = vmatpush1.bf16.msra.mxu0 0
        %1436 = vmatprep.subr.bf16.mxu0 0
        %1437 = vmatpush1.bf16.msra.mxu0 0
        %1438 = vmatprep.subr.bf16.mxu0 0
        %1439 = vmatpush1.bf16.msra.mxu0 0
        %1440 = vmatprep.subr.bf16.mxu0 0
        %1441 = vmatpush1.bf16.msra.mxu0 0
        %1442 = vmatprep.subr.bf16.mxu0 0
        %1443 = vmatpush1.bf16.msra.mxu0 %v1423
        %1444 = vmatprep.subr.bf16.mxu0 0
        %1445 = vmatpush2.bf16.msra.mxu0 0
        %1446 = vmatprep.subr.bf16.mxu0 0
        %1447 = vmatpush2.bf16.msra.mxu0 0
        %1448 = vmatprep.subr.bf16.mxu0 0
        %1449 = vmatpush2.bf16.msra.mxu0 0
        %1450 = vmatprep.subr.bf16.mxu0 0
        %1451 = vmatpush2.bf16.msra.mxu0 0
        %1452 = vmatprep.subr.bf16.mxu0 0
        %1453 = vmatpush2.bf16.msra.mxu0 0
        %1454 = vmatprep.subr.bf16.mxu0 0
        %1455 = vmatpush2.bf16.msra.mxu0 0
        %1456 = vmatprep.subr.bf16.mxu0 0
        %1457 = vmatpush2.bf16.msra.mxu0 0
        %1458 = vmatprep.subr.bf16.mxu0 0
        %1459 = vmatpush2.bf16.msra.mxu0 0
        %1460 = vmatprep.mubr.bf16.mxu0 0
        %1461 = vmatmul.mubr.bf16.gmra.mxu0 %v1426
        %v1462 = vpop.f32.mrf.mxu0
        %v1463 = vadd.f32 0.0, %v1462
        %v1464 = vpop.f32.mrf.mxu0
        %v1465 = vpop.f32.mrf.mxu0
        %v1466 = vpop.f32.mrf.mxu0
        %1467 = vdwg.mxu0
        %v1468 = vrcp.pop %v1420
        %v1469 = vmul.f32 %v1463, %v1468
        %1471 = vrot.lane.b32.xlu0 %v1469, 8
        %v1472 = vpop.permute.xlu0 %1471
        %v1474 = vsel %vm1008, %v1360, %v1472
        %v1475 = vpack.c.bf16 %v1474, %v1474
        %v1477 = vunpack.c.l.b16 %v1475
        %v1478 = vpack.c.b16 %v1477, %v1477
        %1479 = vrot.lane.b32.xlu0 %v1478, 16
        %v1480 = vpop.permute.xlu0 %1479
        %vm1482 = vcmask 257152
        %1483 = vst.msk [vmem:[#allocation4] sm:$0xf] %vm1482, %v1480
        %v1484 = vld [vmem:[#allocation4] sm:$0xf]
        %v1485 = vld [vmem:[#allocation11] sm:$0xf]
        %v1486 = vld [vmem:[#allocation11 + $0x4] sm:$0xf]
        %v1487 = vld [vmem:[#allocation11 + $0x8] sm:$0xf]
        %v1488 = vld [vmem:[#allocation11 + $0xc] sm:$0xf]
        %v1489 = vld [vmem:[%s11] sm:$0x1]
        %v1491 = vlaneseq
        %v1492 = vshrl.u32 %v1491, 7
        %v1493 = vsub.s32 0, %v1492
        %v1494 = vrot.slane %v1489, %v1493
        %v1500 = vunpack.c.l.b16 %v1485
        %v1501 = vunpack.c.l.b16 %v1486
        %v1502 = vunpack.c.l.b16 %v1487
        %v1503 = vunpack.c.l.b16 %v1488
        %v1504 = vpack.c.b16 %v1501, %v1500
        %v1505 = vpack.c.b16 %v1503, %v1502
        %v1509 = vsel %vm901, %v1484, 0
        %1511 = vmatprep.subr.bf16.mxu0 0
        %1512 = vmatpush1.bf16.msra.mxu0 0
        %1513 = vmatprep.subr.bf16.mxu0 0
        %1514 = vmatpush1.bf16.msra.mxu0 0
        %1515 = vmatprep.subr.bf16.mxu0 0
        %1516 = vmatpush1.bf16.msra.mxu0 0
        %1517 = vmatprep.subr.bf16.mxu0 0
        %1518 = vmatpush1.bf16.msra.mxu0 0
        %1519 = vmatprep.subr.bf16.mxu0 0
        %1520 = vmatpush1.bf16.msra.mxu0 0
        %1521 = vmatprep.subr.bf16.mxu0 0
        %1522 = vmatpush1.bf16.msra.mxu0 0
        %1523 = vmatprep.subr.bf16.mxu0 0
        %1524 = vmatpush1.bf16.msra.mxu0 %v1505
        %1525 = vmatprep.subr.bf16.mxu0 0
        %1526 = vmatpush1.bf16.msra.mxu0 %v1504
        %1527 = vmatprep.subr.bf16.mxu0 0
        %1528 = vmatpush2.bf16.msra.mxu0 0
        %1529 = vmatprep.subr.bf16.mxu0 0
        %1530 = vmatpush2.bf16.msra.mxu0 0
        %1531 = vmatprep.subr.bf16.mxu0 0
        %1532 = vmatpush2.bf16.msra.mxu0 0
        %1533 = vmatprep.subr.bf16.mxu0 0
        %1534 = vmatpush2.bf16.msra.mxu0 0
        %1535 = vmatprep.subr.bf16.mxu0 0
        %1536 = vmatpush2.bf16.msra.mxu0 0
        %1537 = vmatprep.subr.bf16.mxu0 0
        %1538 = vmatpush2.bf16.msra.mxu0 0
        %1539 = vmatprep.subr.bf16.mxu0 0
        %1540 = vmatpush2.bf16.msra.mxu0 0
        %1541 = vmatprep.subr.bf16.mxu0 0
        %1542 = vmatpush2.bf16.msra.mxu0 0
        %1543 = vmatprep.mubr.bf16.mxu0 0
        %1544 = vmatmul.mubr.bf16.gmra.mxu0 %v1509
        %v1545 = vpop.f32.mrf.mxu0
        %v1546 = vadd.f32 %v1494, %v1545
        %v1547 = vpop.f32.mrf.mxu0
        %v1548 = vpop.f32.mrf.mxu0
        %v1549 = vpop.f32.mrf.mxu0
        %1550 = vdwg.mxu0
        %v1551 = vadd.f32 %v693, %v1546
        %v1552 = vld [vmem:[%s12] sm:$0x1]
        %v1553 = vld [vmem:[%s13] sm:$0x1]
        %v1554 = vsel %vm901, %v1551, 0.0
        %1555 = vadd.xlane.f32.xlu0 %v1554
        %v1556 = vpop.xlane.xlu0 %1555
        %v1557 = vmul.f32 %v1556, %v905
        %v1558 = vsub.f32 %v1551, %v1557
        %v1559 = vmul.f32 %v1558, %v1558
        %v1560 = vsel %vm901, %v1559, 0.0
        %1561 = vadd.xlane.f32.xlu0 %v1560
        %v1562 = vpop.xlane.xlu0 %1561
        %v1563 = vmul.f32 %v1562, %v905
        %v1564 = vadd.f32 %v1563, 1e-05
        %v1565 = vrsqrt.pop %v1564
        %v1566 = vmul.f32 %v1558, %v1565
        %v1568 = vlaneseq
        %v1569 = vshrl.u32 %v1568, 7
        %v1570 = vsub.s32 0, %v1569
        %v1571 = vrot.slane %v1552, %v1570
        %v1573 = vmul.f32 %v1566, %v1571
        %v1575 = vlaneseq
        %v1576 = vshrl.u32 %v1575, 7
        %v1577 = vsub.s32 0, %v1576
        %v1578 = vrot.slane %v1553, %v1577
        %v1580 = vadd.f32 %v1573, %v1578
        %v1581 = vpack.c.bf16 %v1580, %v1580
        %v1582 = vld [vmem:[#allocation13] sm:$0xf]
        %v1583 = vld [vmem:[#allocation13 + $0x4] sm:$0xf]
        %v1584 = vld [vmem:[#allocation13 + $0x8] sm:$0xf]
        %v1585 = vld [vmem:[#allocation13 + $0xc] sm:$0xf]
        %v1586 = vld [vmem:[%s15] sm:$0x1]
        %v1588 = vlaneseq
        %v1589 = vshrl.u32 %v1588, 7
        %v1590 = vsub.s32 0, %v1589
        %v1591 = vrot.slane %v1586, %v1590
        %v1597 = vunpack.c.l.b16 %v1582
        %v1598 = vunpack.c.l.b16 %v1583
        %v1599 = vunpack.c.l.b16 %v1584
        %v1600 = vunpack.c.l.b16 %v1585
        %v1601 = vpack.c.b16 %v1598, %v1597
        %v1602 = vpack.c.b16 %v1600, %v1599
        %v1606 = vsel %vm901, %v1581, 0
        %1608 = vmatprep.subr.bf16.mxu0 0
        %1609 = vmatpush1.bf16.msra.mxu0 0
        %1610 = vmatprep.subr.bf16.mxu0 0
        %1611 = vmatpush1.bf16.msra.mxu0 0
        %1612 = vmatprep.subr.bf16.mxu0 0
        %1613 = vmatpush1.bf16.msra.mxu0 0
        %1614 = vmatprep.subr.bf16.mxu0 0
        %1615 = vmatpush1.bf16.msra.mxu0 0
        %1616 = vmatprep.subr.bf16.mxu0 0
        %1617 = vmatpush1.bf16.msra.mxu0 0
        %1618 = vmatprep.subr.bf16.mxu0 0
        %1619 = vmatpush1.bf16.msra.mxu0 0
        %1620 = vmatprep.subr.bf16.mxu0 0
        %1621 = vmatpush1.bf16.msra.mxu0 %v1602
        %1622 = vmatprep.subr.bf16.mxu0 0
        %1623 = vmatpush1.bf16.msra.mxu0 %v1601
        %1624 = vmatprep.subr.bf16.mxu0 0
        %1625 = vmatpush2.bf16.msra.mxu0 0
        %1626 = vmatprep.subr.bf16.mxu0 0
        %1627 = vmatpush2.bf16.msra.mxu0 0
        %1628 = vmatprep.subr.bf16.mxu0 0
        %1629 = vmatpush2.bf16.msra.mxu0 0
        %1630 = vmatprep.subr.bf16.mxu0 0
        %1631 = vmatpush2.bf16.msra.mxu0 0
        %1632 = vmatprep.subr.bf16.mxu0 0
        %1633 = vmatpush2.bf16.msra.mxu0 0
        %1634 = vmatprep.subr.bf16.mxu0 0
        %1635 = vmatpush2.bf16.msra.mxu0 0
        %1636 = vmatprep.subr.bf16.mxu0 0
        %1637 = vmatpush2.bf16.msra.mxu0 0
        %1638 = vmatprep.subr.bf16.mxu0 0
        %1639 = vmatpush2.bf16.msra.mxu0 0
        %1640 = vmatprep.mubr.bf16.mxu0 0
        %1641 = vmatmul.mubr.bf16.gmra.mxu0 %v1606
        %v1642 = vpop.f32.mrf.mxu0
        %v1643 = vadd.f32 %v1591, %v1642
        %v1644 = vpop.f32.mrf.mxu0
        %v1645 = vpop.f32.mrf.mxu0
        %v1646 = vpop.f32.mrf.mxu0
        %1647 = vdwg.mxu0
        %v1648 = vmul.f32 %v1643, 0.5
        %v1649 = vmul.f32 %v1643, 0.70710677
        %v1650 = verf.f32.pop %v1649
        %v1651 = vadd.f32 %v1650, 1.0
        %v1652 = vmul.f32 %v1648, %v1651
        %v1653 = vpack.c.bf16 %v1652, %v1652
        %v1654 = vld [vmem:[%s16] sm:$0xf]
        %v1655 = vld [vmem:[%s16 + $0x4] sm:$0xf]
        %v1656 = vld [vmem:[%s16 + $0x8] sm:$0xf]
        %v1657 = vld [vmem:[%s16 + $0xc] sm:$0xf]
        %v1658 = vld [vmem:[%s16 + $0x10] sm:$0xf]
        %v1659 = vld [vmem:[%s16 + $0x14] sm:$0xf]
        %v1660 = vld [vmem:[%s16 + $0x18] sm:$0xf]
        %v1661 = vld [vmem:[%s16 + $0x1c] sm:$0xf]
        %v1662 = vld [vmem:[%s17] sm:$0x1]
        %v1664 = vlaneseq
        %v1665 = vshrl.u32 %v1664, 7
        %v1666 = vsub.s32 0, %v1665
        %v1667 = vrot.slane %v1662, %v1666
        %v1677 = vunpack.c.l.b16 %v1654
        %v1678 = vunpack.c.l.b16 %v1655
        %v1679 = vunpack.c.l.b16 %v1656
        %v1680 = vunpack.c.l.b16 %v1657
        %v1681 = vunpack.c.l.b16 %v1658
        %v1682 = vunpack.c.l.b16 %v1659
        %v1683 = vunpack.c.l.b16 %v1660
        %v1684 = vunpack.c.l.b16 %v1661
        %v1685 = vpack.c.b16 %v1678, %v1677
        %v1686 = vpack.c.b16 %v1680, %v1679
        %v1687 = vpack.c.b16 %v1682, %v1681
        %v1688 = vpack.c.b16 %v1684, %v1683
        %vm1693 = vcmask 523264
        %v1695 = vsel %vm1693, %v1653, 0
        %1697 = vmatprep.subr.bf16.mxu0 0
        %1698 = vmatpush1.bf16.msra.mxu0 0
        %1699 = vmatprep.subr.bf16.mxu0 0
        %1700 = vmatpush1.bf16.msra.mxu0 0
        %1701 = vmatprep.subr.bf16.mxu0 0
        %1702 = vmatpush1.bf16.msra.mxu0 0
        %1703 = vmatprep.subr.bf16.mxu0 0
        %1704 = vmatpush1.bf16.msra.mxu0 0
        %1705 = vmatprep.subr.bf16.mxu0 0
        %1706 = vmatpush1.bf16.msra.mxu0 %v1688
        %1707 = vmatprep.subr.bf16.mxu0 0
        %1708 = vmatpush1.bf16.msra.mxu0 %v1687
        %1709 = vmatprep.subr.bf16.mxu0 0
        %1710 = vmatpush1.bf16.msra.mxu0 %v1686
        %1711 = vmatprep.subr.bf16.mxu0 0
        %1712 = vmatpush1.bf16.msra.mxu0 %v1685
        %1713 = vmatprep.subr.bf16.mxu0 0
        %1714 = vmatpush2.bf16.msra.mxu0 0
        %1715 = vmatprep.subr.bf16.mxu0 0
        %1716 = vmatpush2.bf16.msra.mxu0 0
        %1717 = vmatprep.subr.bf16.mxu0 0
        %1718 = vmatpush2.bf16.msra.mxu0 0
        %1719 = vmatprep.subr.bf16.mxu0 0
        %1720 = vmatpush2.bf16.msra.mxu0 0
        %1721 = vmatprep.subr.bf16.mxu0 0
        %1722 = vmatpush2.bf16.msra.mxu0 0
        %1723 = vmatprep.subr.bf16.mxu0 0
        %1724 = vmatpush2.bf16.msra.mxu0 0
        %1725 = vmatprep.subr.bf16.mxu0 0
        %1726 = vmatpush2.bf16.msra.mxu0 0
        %1727 = vmatprep.subr.bf16.mxu0 0
        %1728 = vmatpush2.bf16.msra.mxu0 0
        %1729 = vmatprep.mubr.bf16.mxu0 0
        %1730 = vmatmul.mubr.bf16.gmra.mxu0 %v1695
        %v1731 = vpop.f32.mrf.mxu0
        %v1732 = vadd.f32 %v1667, %v1731
        %v1733 = vpop.f32.mrf.mxu0
        %v1734 = vpop.f32.mrf.mxu0
        %v1735 = vpop.f32.mrf.mxu0
        %1736 = vdwg.mxu0
        %v1737 = vadd.f32 %v1551, %v1732
        %1738 = vst.msk [vmem:[%s678] sm:$0xff] %vm901, %v1737
        %s1739 = sand.u32 %s447, 1
        %s1740 = scalar_lea.sflag [#allocation7], %s1739
        %s1741 = sand.u32 %s447, 1
        %s1742 = smul.addr %s1741, 8
        %s1743 = scalar_lea.vmem [#allocation14], %s1742
        // Predicated region
        $region117: #{tpu_custom_call.1} parent=91 // pred_check
          %p1744 = pneg %p457
        $region118: #{tpu_custom_call.1} parent=91 // pred_check_branch
          %1746 = sbr.rel (%p1744) target = $region120
        $region119: #{tpu_custom_call.1} parent=91 // pred_region
          %s1748 = ssub.s32 128, 128
          %1749 = vsyncadd %s1740, %s1748
          %s1750 = smul.addr %s39, 2
          %s1751 = sadd.s32 %s40, %s1750
          %s1752 = smul.addr %s1751, 128
          %s1753 = scalar_lea.hbm %s18, %s1752
          %s1755 = sshll.u32 %s1743, 4
          %s1756 = int_to_ptr.vmem [resolvable:$true] %s1755
          %1758 = dma.vmem_to_hbm [thread:$0]  %s1756, 128, %s1753, %s1740
        $region120: #{tpu_custom_call.1} parent=91 // pred_fallthru
          _
      $region92: #{tpu_custom_call.1} parent=5 // pred_fallthru
        _
      %p1759 = scmp.le.s32.totalorder 2, %s30
      // Predicated region
      $region121: #{tpu_custom_call.1} parent=5 // pred_check
        %p1760 = pneg %p1759
      $region122: #{tpu_custom_call.1} parent=5 // pred_check_branch
        %1762 = sbr.rel (%p1760) target = $region124
      $region123: #{tpu_custom_call.1} parent=5 // pred_region
        %s1763 = ssub.s32 %s30, 2
        // Predicated region
        $region125: #{tpu_custom_call.1} parent=123 // pred_check
          %p1764 = pneg %p463
        $region126: #{tpu_custom_call.1} parent=123 // pred_check_branch
          %1766 = sbr.rel (%p1764) target = $region128
        $region127: #{tpu_custom_call.1} parent=123 // pred_region
          %s1767 = sand.u32 %s448, 1
          %s1768 = scalar_lea.sflag [#allocation7], %s1767
          %s1769 = sand.u32 %s448, 1
          %s1770 = smul.addr %s1769, 8
          %s1771 = scalar_lea.vmem [#allocation14], %s1770
          %1772 = dma.done %s1768, 128
        $region128: #{tpu_custom_call.1} parent=123 // pred_fallthru
          _
      $region124: #{tpu_custom_call.1} parent=5 // pred_fallthru
        _
    $region6: #{tpu_custom_call.1} parent=1 // loop_footer
      %s34 = sadd.s32 1, %s30
    $region7: #{tpu_custom_call.1} parent=1 // loop_footer_branch
      %29 = sbr.rel target = $region3
    $region8: #{tpu_custom_call.1} parent=1 // loop_exit
      _
    %1773 = vsyncpa [#allocation6], 1
    %s1774 = scalar_lea.sflag [#allocation6], 1
    %1775 = vsyncpa %s1774, 1
    %1776 = vsyncpa [#allocation9], 1
    %1777 = vsyncpa [#allocation12], 1
    %1778 = vsyncpa [#allocation7], 1
    %s1779 = scalar_lea.sflag [#allocation7], 1
    %1780 = vsyncpa %s1779, 1

</llo_original>
